<compile_context>
chip_gen: v6e
topology: v6e:2x2x1
jax: 0.10.0
libtpu: 0.0.40
codegen_flags: <defaults>
</compile_context>

<pallas_src>
import jax
import jax.numpy as jnp
from jax.experimental import pallas as pl
from jax.experimental.pallas import tpu as pltpu


IN_DIM = 784
K_PAD = 896  # 7 * 128, lane-aligned K


def _softplus(x):
    # Numerically stable softplus, matching torch.nn.Softplus (beta=1, threshold=20).
    return jnp.where(x > 20.0, x, jnp.log1p(jnp.exp(jnp.minimum(x, 20.0))))


def encoder_kernel(x_ref, w1_ref, b1_ref, wf_ref, bf_ref, out_ref):
    # x_ref:  (tile_b, K_PAD)   compute dtype (bf16)
    # w1_ref: (K_PAD, h_dim)    compute dtype
    # b1_ref: (1, h_dim)        f32
    # wf_ref: (h_dim, 2*z_dim)  compute dtype  (W21 || W22 fused)
    # bf_ref: (1, 2*z_dim)      f32            (b21 || b22 fused)
    # out_ref:(tile_b, 2*z_dim) f32            ([mean | pre-softplus'd var])
    x = x_ref[...]

    # fc1 (bf16 MXU, f32 accumulate) + bias + softplus in f32.
    h = jnp.dot(x, w1_ref[...], preferred_element_type=jnp.float32) + b1_ref[...]
    h = _softplus(h)

    # Fused heads: one matmul produces [mean_pre | var_pre].
    h_c = h.astype(wf_ref.dtype)
    fused = jnp.dot(h_c, wf_ref[...], preferred_element_type=jnp.float32) + bf_ref[...]

    z2 = fused.shape[-1]
    z = z2 // 2
    col = jax.lax.broadcasted_iota(jnp.int32, fused.shape, dimension=1)
    sp = _softplus(fused)
    # Left half (mean) passes through; right half (var) gets softplus.
    out_ref[...] = jnp.where(col < z, fused, sp).astype(out_ref.dtype)


def encoder_forward(x, params, *, tile_b=512, compute_dtype=jnp.bfloat16):
    """x: any shape that flattens to (-1, 784). Returns (mean, var) in f32."""
    w1, b1, w21, b21, w22, b22 = params
    x2d = x.reshape(-1, IN_DIM).astype(jnp.float32)
    B = x2d.shape[0]
    h_dim = w1.shape[1]
    z_dim = w21.shape[1]

    # --- wrapper-side layout prep (done once, outside the kernel) ---
    # Pad K to a multiple of 128 with zero columns / zero weight rows.
    x_p = jnp.pad(x2d, ((0, 0), (0, K_PAD - IN_DIM)))
    w1_p = jnp.pad(w1, ((0, K_PAD - IN_DIM), (0, 0)))

    # Fuse the two heads into one wider matmul / output slab.
    wf = jnp.concatenate([w21, w22], axis=1)      # (h_dim, 2*z_dim)
    bf = jnp.concatenate([b21, b22], axis=1)      # (1, 2*z_dim)

    # Batch tile: as large as requested, multiple of 8, no bigger than needed.
    tile = min(int(tile_b), pl.cdiv(B, 8) * 8)
    tile = max(8, (tile // 8) * 8)
    B_pad = pl.cdiv(B, tile) * tile
    if B_pad != B:
        x_p = jnp.pad(x_p, ((0, B_pad - B), (0, 0)))

    # bf16 matmul operands, f32 biases.
    x_c = x_p.astype(compute_dtype)
    w1_c = w1_p.astype(compute_dtype)
    wf_c = wf.astype(compute_dtype)
    b1_f = b1.astype(jnp.float32)
    bf_f = bf.astype(jnp.float32)

    grid = (B_pad // tile,)
    full = lambda i: (0, 0)

    out = pl.pallas_call(
        encoder_kernel,
        out_shape=jax.ShapeDtypeStruct((B_pad, 2 * z_dim), jnp.float32),
        grid_spec=pltpu.PrefetchScalarGridSpec(
            num_scalar_prefetch=0,
            grid=grid,
            in_specs=[
                pl.BlockSpec((tile, K_PAD), lambda i: (i, 0)),       # x tile
                pl.BlockSpec((K_PAD, h_dim), full),                  # W1 (padded)
                pl.BlockSpec((1, h_dim), full),                      # b1
                pl.BlockSpec((h_dim, 2 * z_dim), full),              # W21||W22
                pl.BlockSpec((1, 2 * z_dim), full),                  # b21||b22
            ],
            out_specs=pl.BlockSpec((tile, 2 * z_dim), lambda i: (i, 0)),
        ),
        compiler_params=pltpu.CompilerParams(
            dimension_semantics=("parallel",)),
    )(x_c, w1_c, b1_f, wf_c, bf_f)

    out = out[:B]
    mean = out[:, :z_dim]
    var = out[:, z_dim:]
    return mean, var


def init_params(key, h_dim, z_dim):
    """Deterministic init matching PyTorch Linear shapes (stored as (in, out))."""
    ks = jax.random.split(key, 6)

    def lin(kw, kb, fan_in, fan_out):
        bound = 1.0 / jnp.sqrt(fan_in)
        w = jax.random.uniform(kw, (fan_in, fan_out), jnp.float32, -bound, bound)
        b = jax.random.uniform(kb, (1, fan_out), jnp.float32, -bound, bound)
        return w, b

    w1, b1 = lin(ks[0], ks[1], IN_DIM, h_dim)
    w21, b21 = lin(ks[2], ks[3], h_dim, z_dim)
    w22, b22 = lin(ks[4], ks[5], h_dim, z_dim)
    return (w1, b1, w21, b21, w22, b22)


def _reference(x, params):
    """Plain-JAX f32 reference matching the PyTorch forward semantics."""
    w1, b1, w21, b21, w22, b22 = params
    x2d = x.reshape(-1, IN_DIM).astype(jnp.float32)
    h = jax.nn.softplus(x2d @ w1 + b1)
    mean = h @ w21 + b21
    var = jax.nn.softplus(h @ w22 + b22)
    return mean, var


if __name__ == "__main__":
    key = jax.random.PRNGKey(0)
    k_x, k_p = jax.random.split(key)

    batch, h_dim, z_dim = 250, 64, 16      # non-multiple batch exercises padding path
    # MNIST-like input: (B, 1, 28, 28) -> flattened to (B, 784) in forward.
    x = jax.random.normal(k_x, (batch, 1, 28, 28), jnp.float32)
    params = init_params(k_p, h_dim, z_dim)

    # tile_b=128 -> padded batch 256, grid=(2,) so both v7x TensorCores get work.
    mean, var = encoder_forward(x, params, tile_b=128)
    jax.block_until_ready((mean, var))

    # Numerical sanity check against f32 reference (bf16 matmul inputs -> loose tol).
    mean_ref, var_ref = _reference(x, params)
    assert mean.shape == mean_ref.shape and var.shape == var_ref.shape
    assert jnp.allclose(mean, mean_ref, atol=3e-2, rtol=3e-2)
    assert jnp.allclose(var, var_ref, atol=3e-2, rtol=3e-2)

    print("KERNEL_OK")
</pallas_src>

<mosaic_0001>
module attributes {stable_mosaic.version = 11 : i64} {
  func.func @encoder_kernel(%arg0: i32, %arg1: memref<128x896xbf16, #tpu.memory_space<vmem>>, %arg2: memref<896x64xbf16, #tpu.memory_space<vmem>>, %arg3: memref<1x64xf32, #tpu.memory_space<vmem>>, %arg4: memref<64x32xbf16, #tpu.memory_space<vmem>>, %arg5: memref<1x32xf32, #tpu.memory_space<vmem>>, %arg6: memref<128x32xf32, #tpu.memory_space<vmem>>) attributes {dimension_semantics = [#tpu.dimension_semantics<parallel>], iteration_bounds = array<i64: 2>, scalar_prefetch = 0 : i64, scratch_operands = 0 : i64, tpu.core_type = #tpu.core_type<tc>, window_params = [{transform_indices = @transform_0, window_bounds = array<i64: 128, 896>}, {pipeline_mode = #tpu.pipeline_mode<synchronous>, transform_indices = @transform_1, window_bounds = array<i64: 896, 64>}, {pipeline_mode = #tpu.pipeline_mode<synchronous>, transform_indices = @transform_2, window_bounds = array<i64: 1, 64>}, {pipeline_mode = #tpu.pipeline_mode<synchronous>, transform_indices = @transform_3, window_bounds = array<i64: 64, 32>}, {pipeline_mode = #tpu.pipeline_mode<synchronous>, transform_indices = @transform_4, window_bounds = array<i64: 1, 32>}, {transform_indices = @transform_5, window_bounds = array<i64: 128, 32>}]} {
    %c0 = arith.constant 0 : index
    %c0_0 = arith.constant 0 : index
    %0 = vector.load %arg1[%c0, %c0_0] : memref<128x896xbf16, #tpu.memory_space<vmem>>, vector<128x896xbf16>
    %c0_1 = arith.constant 0 : index
    %c0_2 = arith.constant 0 : index
    %1 = vector.load %arg2[%c0_1, %c0_2] : memref<896x64xbf16, #tpu.memory_space<vmem>>, vector<896x64xbf16>
    %cst = arith.constant dense<0.000000e+00> : vector<128x64xf32>
    %2 = tpu.matmul %0, %1, %cst {dimension_numbers = #tpu.dot_dimension_numbers<[1], [0], [0], [1], [0, 0, 1, 1], [], []>} : vector<128x896xbf16>, vector<896x64xbf16>, vector<128x64xf32> -> vector<128x64xf32>
    %c0_3 = arith.constant 0 : index
    %c0_4 = arith.constant 0 : index
    %3 = vector.load %arg3[%c0_3, %c0_4] : memref<1x64xf32, #tpu.memory_space<vmem>>, vector<1x64xf32>
    %4 = vector.broadcast %3 : vector<1x64xf32> to vector<128x64xf32>
    %5 = arith.addf %2, %4 : vector<128x64xf32>
    %cst_5 = arith.constant 2.000000e+01 : f32
    %6 = vector.broadcast %cst_5 : f32 to vector<128x64xf32>
    %7 = arith.cmpf ogt, %5, %6 : vector<128x64xf32>
    %cst_6 = arith.constant 2.000000e+01 : f32
    %8 = vector.broadcast %cst_6 : f32 to vector<128x64xf32>
    %9 = arith.minimumf %5, %8 : vector<128x64xf32>
    %10 = math.exp %9 : vector<128x64xf32>
    %11 = math.log1p %10 : vector<128x64xf32>
    %12 = arith.select %7, %5, %11 : vector<128x64xi1>, vector<128x64xf32>
    %13 = arith.truncf %12 : vector<128x64xf32> to vector<128x64xbf16>
    %c0_7 = arith.constant 0 : index
    %c0_8 = arith.constant 0 : index
    %14 = vector.load %arg4[%c0_7, %c0_8] : memref<64x32xbf16, #tpu.memory_space<vmem>>, vector<64x32xbf16>
    %cst_9 = arith.constant dense<0.000000e+00> : vector<128x32xf32>
    %15 = tpu.matmul %13, %14, %cst_9 {dimension_numbers = #tpu.dot_dimension_numbers<[1], [0], [0], [1], [0, 0, 1, 1], [], []>} : vector<128x64xbf16>, vector<64x32xbf16>, vector<128x32xf32> -> vector<128x32xf32>
    %c0_10 = arith.constant 0 : index
    %c0_11 = arith.constant 0 : index
    %16 = vector.load %arg5[%c0_10, %c0_11] : memref<1x32xf32, #tpu.memory_space<vmem>>, vector<1x32xf32>
    %17 = vector.broadcast %16 : vector<1x32xf32> to vector<128x32xf32>
    %18 = arith.addf %15, %17 : vector<128x32xf32>
    %19 = tpu.iota {dimensions = array<i32: 1>} : vector<128x32xi32>
    %cst_12 = arith.constant 2.000000e+01 : f32
    %20 = vector.broadcast %cst_12 : f32 to vector<128x32xf32>
    %21 = arith.cmpf ogt, %18, %20 : vector<128x32xf32>
    %cst_13 = arith.constant 2.000000e+01 : f32
    %22 = vector.broadcast %cst_13 : f32 to vector<128x32xf32>
    %23 = arith.minimumf %18, %22 : vector<128x32xf32>
    %24 = math.exp %23 : vector<128x32xf32>
    %25 = math.log1p %24 : vector<128x32xf32>
    %26 = arith.select %21, %18, %25 : vector<128x32xi1>, vector<128x32xf32>
    %c16_i32 = arith.constant 16 : i32
    %27 = vector.broadcast %c16_i32 : i32 to vector<128x32xi32>
    %28 = arith.cmpi slt, %19, %27 : vector<128x32xi32>
    %29 = arith.select %28, %18, %26 : vector<128x32xi1>, vector<128x32xf32>
    %c0_14 = arith.constant 0 : index
    %c0_15 = arith.constant 0 : index
    %30 = vector.load %arg6[%c0_14, %c0_15] : memref<128x32xf32, #tpu.memory_space<vmem>>, vector<128x32xf32>
    tpu.vector_store %arg6[%c0_14, %c0_15], %29 {strides = array<i32>} : memref<128x32xf32, #tpu.memory_space<vmem>>, vector<128x32xf32>,
    return
  }
  func.func @transform_0(%arg0: i32) -> (i32, i32) {
    %c0_i32 = arith.constant 0 : i32
    %c0_i32_0 = arith.constant 0 : i32
    return %arg0, %c0_i32 : i32, i32
  }
  func.func @transform_1(%arg0: i32) -> (i32, i32) {
    %c0_i32 = arith.constant 0 : i32
    %c0_i32_0 = arith.constant 0 : i32
    %c0_i32_1 = arith.constant 0 : i32
    return %c0_i32, %c0_i32_0 : i32, i32
  }
  func.func @transform_2(%arg0: i32) -> (i32, i32) {
    %c0_i32 = arith.constant 0 : i32
    %c0_i32_0 = arith.constant 0 : i32
    %c0_i32_1 = arith.constant 0 : i32
    return %c0_i32, %c0_i32_0 : i32, i32
  }
  func.func @transform_3(%arg0: i32) -> (i32, i32) {
    %c0_i32 = arith.constant 0 : i32
    %c0_i32_0 = arith.constant 0 : i32
    %c0_i32_1 = arith.constant 0 : i32
    return %c0_i32, %c0_i32_0 : i32, i32
  }
  func.func @transform_4(%arg0: i32) -> (i32, i32) {
    %c0_i32 = arith.constant 0 : i32
    %c0_i32_0 = arith.constant 0 : i32
    %c0_i32_1 = arith.constant 0 : i32
    return %c0_i32, %c0_i32_0 : i32, i32
  }
  func.func @transform_5(%arg0: i32) -> (i32, i32) {
    %c0_i32 = arith.constant 0 : i32
    %c0_i32_0 = arith.constant 0 : i32
    return %arg0, %c0_i32 : i32, i32
  }
}

</mosaic_0001>

<llo_original>
// kernel: tpu_custom_call.1
$region0: #{tpu_custom_call.1}
  #allocation0 [shape = 'u32[]', space=smem, size = 0x4, offset = 0x4, fixed_abs, tag = 'smem constant byte address 0x4 - core index']
  #allocation1 [shape = 'u32[144,128]{1,0:T(1,128)}', space=vmem, size = 0x12000, scoped, tag = 'internal scratch']
  %s0 = inlined_call_operand.hbm [shape: bf16[256,896], index: 0, kind: input, shape index: {}]
  %s1 = inlined_call_operand.vmem [shape: bf16[896,64], index: 1, kind: input, shape index: {}]
  %s2 = inlined_call_operand.vmem [shape: f32[1,64], index: 2, kind: input, shape index: {}]
  %s3 = inlined_call_operand.vmem [shape: bf16[64,32], index: 3, kind: input, shape index: {}]
  %s4 = inlined_call_operand.vmem [shape: f32[1,32], index: 4, kind: input, shape index: {}]
  %s5 = inlined_call_operand.vmem [shape: f32[256,32], index: 5, kind: output, shape index: {}]
  %s6 = sld [smem:[#allocation0]]
  $region57: #{tpu_custom_call.1} parent=0
    _
  %s8 = ssub.s32 1, %s6
  %s9 = scalar_select 0, %s8, %s6
  $region1: #{tpu_custom_call.1} parent=0
    #allocation2 [shape = 'u8[458752]{0}', space=vmem, size = 0x70000, scoped, tag = 'input window, operand 0']
    #allocation3 [shape = 's32[2]{0}', space=sflag, size = 0x8, scoped, tag = 'scoped memory for tpu_custom_call.1']
    %10 = vsyncpa [#allocation3], 0
    %s11 = scalar_lea.sflag [#allocation3], 1
    %12 = vsyncpa %s11, 0
    loop: start=0, step=1, limit=4
    $region2: #{tpu_custom_call.1} parent=1 // loop_pre_header
      _
    $region3: #{tpu_custom_call.1} parent=1 // loop_header
      %s14 = sphi 0, %s18
      %p15 = scmp.ge.s32.totalorder %s14, 4
      %s24 = sphi 0, %s26
      %s27 = sphi 0, %s24
      %s28 = sphi 0, %s27
      %s44 = sphi 0, %s28
      %s48 = sphi 0, %s48
      %s50 = sphi 0, %s48
      %s51 = sphi 0, %s50
      %s65 = sphi 0, %s51
      %s69 = sphi 0, %s69
      %s71 = sphi 0, %s69
      %s72 = sphi 0, %s71
      %s86 = sphi 0, %s72
      %s90 = sphi 0, %s90
      %s92 = sphi 0, %s90
      %s93 = sphi 0, %s92
      %s107 = sphi 0, %s93
      %s111 = sphi 0, %s111
      %s113 = sphi 0, %s111
      %s114 = sphi 0, %s113
      %s128 = sphi 0, %s114
      %s134 = sphi 0, %s136
      %s137 = sphi 0, %s134
      %s138 = sphi 0, %s137
      %s154 = sphi 0, %s138
    $region4: #{tpu_custom_call.1} parent=1 // loop_header_branch
      %17 = sbr.rel (%p15) target = $region8
    $region5: #{tpu_custom_call.1} parent=1 // loop_body
      %s19 = ssub.s32 %s14, 1
      %s20 = ssub.s32 %s14, 2
      %s21 = sadd.s32 %s14, 1
      %s22 = ssub.s32 %s14, %s21
      %p23 = scmp.eq.s32.totalorder %s22, 0
      %s25 = sadd.s32 %s24, 1
      %s26 = scalar_select %p23, %s24, %s25
      %p29 = pneg %p23
      %p30 = scmp.eq.s32.totalorder %s14, 1
      %p31 = por %p29, %p30
      %p32 = scmp.ne.s32.totalorder %s24, %s27
      %p33 = scmp.eq.s32.totalorder %s14, 0
      %p34 = por %p32, %p33
      %p35 = scmp.ne.s32.totalorder %s24, %s27
      %p36 = scmp.eq.s32.totalorder %s19, 1
      %p37 = por %p35, %p36
      %p38 = scmp.ne.s32.totalorder %s27, %s28
      %p39 = scmp.eq.s32.totalorder %s19, 0
      %p40 = por %p38, %p39
      %p41 = scmp.ne.s32.totalorder %s27, %s28
      %p42 = scmp.eq.s32.totalorder %s20, 1
      %p43 = por %p41, %p42
      %p45 = scmp.ne.s32.totalorder %s28, %s44
      %p46 = scmp.eq.s32.totalorder %s20, 0
      %p47 = por %p45, %p46
      %s49 = sadd.s32 %s48, 1
      %p52 = scmp.eq.s32.totalorder %s14, 1
      %p53 = scmp.ne.s32.totalorder %s48, %s50
      %p54 = scmp.eq.s32.totalorder %s14, 0
      %p55 = por %p53, %p54
      %p56 = scmp.ne.s32.totalorder %s48, %s50
      %p57 = scmp.eq.s32.totalorder %s19, 1
      %p58 = por %p56, %p57
      %p59 = scmp.ne.s32.totalorder %s50, %s51
      %p60 = scmp.eq.s32.totalorder %s19, 0
      %p61 = por %p59, %p60
      %p62 = scmp.ne.s32.totalorder %s50, %s51
      %p63 = scmp.eq.s32.totalorder %s20, 1
      %p64 = por %p62, %p63
      %p66 = scmp.ne.s32.totalorder %s51, %s65
      %p67 = scmp.eq.s32.totalorder %s20, 0
      %p68 = por %p66, %p67
      %s70 = sadd.s32 %s69, 1
      %p73 = scmp.eq.s32.totalorder %s14, 1
      %p74 = scmp.ne.s32.totalorder %s69, %s71
      %p75 = scmp.eq.s32.totalorder %s14, 0
      %p76 = por %p74, %p75
      %p77 = scmp.ne.s32.totalorder %s69, %s71
      %p78 = scmp.eq.s32.totalorder %s19, 1
      %p79 = por %p77, %p78
      %p80 = scmp.ne.s32.totalorder %s71, %s72
      %p81 = scmp.eq.s32.totalorder %s19, 0
      %p82 = por %p80, %p81
      %p83 = scmp.ne.s32.totalorder %s71, %s72
      %p84 = scmp.eq.s32.totalorder %s20, 1
      %p85 = por %p83, %p84
      %p87 = scmp.ne.s32.totalorder %s72, %s86
      %p88 = scmp.eq.s32.totalorder %s20, 0
      %p89 = por %p87, %p88
      %s91 = sadd.s32 %s90, 1
      %p94 = scmp.eq.s32.totalorder %s14, 1
      %p95 = scmp.ne.s32.totalorder %s90, %s92
      %p96 = scmp.eq.s32.totalorder %s14, 0
      %p97 = por %p95, %p96
      %p98 = scmp.ne.s32.totalorder %s90, %s92
      %p99 = scmp.eq.s32.totalorder %s19, 1
      %p100 = por %p98, %p99
      %p101 = scmp.ne.s32.totalorder %s92, %s93
      %p102 = scmp.eq.s32.totalorder %s19, 0
      %p103 = por %p101, %p102
      %p104 = scmp.ne.s32.totalorder %s92, %s93
      %p105 = scmp.eq.s32.totalorder %s20, 1
      %p106 = por %p104, %p105
      %p108 = scmp.ne.s32.totalorder %s93, %s107
      %p109 = scmp.eq.s32.totalorder %s20, 0
      %p110 = por %p108, %p109
      %s112 = sadd.s32 %s111, 1
      %p115 = scmp.eq.s32.totalorder %s14, 1
      %p116 = scmp.ne.s32.totalorder %s111, %s113
      %p117 = scmp.eq.s32.totalorder %s14, 0
      %p118 = por %p116, %p117
      %p119 = scmp.ne.s32.totalorder %s111, %s113
      %p120 = scmp.eq.s32.totalorder %s19, 1
      %p121 = por %p119, %p120
      %p122 = scmp.ne.s32.totalorder %s113, %s114
      %p123 = scmp.eq.s32.totalorder %s19, 0
      %p124 = por %p122, %p123
      %p125 = scmp.ne.s32.totalorder %s113, %s114
      %p126 = scmp.eq.s32.totalorder %s20, 1
      %p127 = por %p125, %p126
      %p129 = scmp.ne.s32.totalorder %s114, %s128
      %p130 = scmp.eq.s32.totalorder %s20, 0
      %p131 = por %p129, %p130
      %s132 = ssub.s32 %s14, %s21
      %p133 = scmp.eq.s32.totalorder %s132, 0
      %s135 = sadd.s32 %s134, 1
      %s136 = scalar_select %p133, %s134, %s135
      %p139 = pneg %p133
      %p140 = scmp.eq.s32.totalorder %s14, 1
      %p141 = por %p139, %p140
      %p142 = scmp.ne.s32.totalorder %s134, %s137
      %p143 = scmp.eq.s32.totalorder %s14, 0
      %p144 = por %p142, %p143
      %p145 = scmp.ne.s32.totalorder %s134, %s137
      %p146 = scmp.eq.s32.totalorder %s19, 1
      %p147 = por %p145, %p146
      %p148 = scmp.ne.s32.totalorder %s137, %s138
      %p149 = scmp.eq.s32.totalorder %s19, 0
      %p150 = por %p148, %p149
      %p151 = scmp.ne.s32.totalorder %s137, %s138
      %p152 = scmp.eq.s32.totalorder %s20, 1
      %p153 = por %p151, %p152
      %p155 = scmp.ne.s32.totalorder %s138, %s154
      %p156 = scmp.eq.s32.totalorder %s20, 0
      %p157 = por %p155, %p156
      %p158 = scmp.le.s32.totalorder 1, %s14
      %p159 = scmp.lt.s32.totalorder %s14, 3
      %p160 = pnand %p158, %p159
      %p161 = pneg %p160
      // Predicated region
      $region9: #{tpu_custom_call.1} parent=5 // pred_check
        _
      $region10: #{tpu_custom_call.1} parent=5 // pred_check_branch
        %163 = sbr.rel (%p160) target = $region12
      $region11: #{tpu_custom_call.1} parent=5 // pred_region
        %s164 = ssub.s32 %s14, 1
        // Predicated region
        $region13: #{tpu_custom_call.1} parent=11 // pred_check
          %p165 = pneg %p61
        $region14: #{tpu_custom_call.1} parent=11 // pred_check_branch
          %167 = sbr.rel (%p165) target = $region16
        $region15: #{tpu_custom_call.1} parent=11 // pred_region
          _
        $region16: #{tpu_custom_call.1} parent=11 // pred_fallthru
          _
        // Predicated region
        $region17: #{tpu_custom_call.1} parent=11 // pred_check
          %p168 = pneg %p82
        $region18: #{tpu_custom_call.1} parent=11 // pred_check_branch
          %170 = sbr.rel (%p168) target = $region20
        $region19: #{tpu_custom_call.1} parent=11 // pred_region
          _
        $region20: #{tpu_custom_call.1} parent=11 // pred_fallthru
          _
        // Predicated region
        $region21: #{tpu_custom_call.1} parent=11 // pred_check
          %p171 = pneg %p103
        $region22: #{tpu_custom_call.1} parent=11 // pred_check_branch
          %173 = sbr.rel (%p171) target = $region24
        $region23: #{tpu_custom_call.1} parent=11 // pred_region
          _
        $region24: #{tpu_custom_call.1} parent=11 // pred_fallthru
          _
        // Predicated region
        $region25: #{tpu_custom_call.1} parent=11 // pred_check
          %p174 = pneg %p124
        $region26: #{tpu_custom_call.1} parent=11 // pred_check_branch
          %176 = sbr.rel (%p174) target = $region28
        $region27: #{tpu_custom_call.1} parent=11 // pred_region
          _
        $region28: #{tpu_custom_call.1} parent=11 // pred_fallthru
          _
      $region12: #{tpu_custom_call.1} parent=5 // pred_fallthru
        _
      %p177 = scmp.lt.s32.totalorder %s14, 2
      // Predicated region
      $region29: #{tpu_custom_call.1} parent=5 // pred_check
        %p178 = pneg %p177
      $region30: #{tpu_custom_call.1} parent=5 // pred_check_branch
        %180 = sbr.rel (%p178) target = $region32
      $region31: #{tpu_custom_call.1} parent=5 // pred_region
        // Predicated region
        $region33: #{tpu_custom_call.1} parent=31 // pred_check
          %p181 = pneg %p34
        $region34: #{tpu_custom_call.1} parent=31 // pred_check_branch
          %183 = sbr.rel (%p181) target = $region36
        $region35: #{tpu_custom_call.1} parent=31 // pred_region
          %s184 = sand.u32 %s24, 1
          %s185 = scalar_lea.sflag [#allocation3], %s184
          %s186 = sand.u32 %s24, 1
          %s187 = smul.addr %s186, 448
          %s188 = scalar_lea.vmem [#allocation2], %s187
          %s189 = smul.u32 16, %s14
          %s191 = ssub.s32 7168, 7168
          %192 = vsyncadd %s185, %s191
          %s193 = smul.addr %s189, 7
          %s194 = smul.addr %s193, 64
          %s195 = scalar_lea.hbm %s0, %s194
          %s196 = sshll.u32 %s188, 4
          %s197 = int_to_ptr.vmem [resolvable:$true] %s196
          %202 = dma.hbm_to_vmem [thread:$0]  %s195, 7168, %s197, %s185, 448, 448, 28
        $region36: #{tpu_custom_call.1} parent=31 // pred_fallthru
          _
      $region32: #{tpu_custom_call.1} parent=5 // pred_fallthru
        _
      %p203 = scmp.le.s32.totalorder 1, %s14
      %p204 = scmp.lt.s32.totalorder %s14, 3
      %p205 = pnand %p203, %p204
      %p206 = pneg %p205
      // Predicated region
      $region37: #{tpu_custom_call.1} parent=5 // pred_check
        _
      $region38: #{tpu_custom_call.1} parent=5 // pred_check_branch
        %208 = sbr.rel (%p205) target = $region40
      $region39: #{tpu_custom_call.1} parent=5 // pred_region
        %s209 = ssub.s32 %s14, 1
        %s210 = sand.u32 %s27, 1
        %s211 = scalar_lea.sflag [#allocation3], %s210
        %s212 = sand.u32 %s27, 1
        %s213 = smul.addr %s212, 448
        %s214 = scalar_lea.vmem [#allocation2], %s213
        // Predicated region
        $region41: #{tpu_custom_call.1} parent=39 // pred_check
          %p215 = pneg %p40
        $region42: #{tpu_custom_call.1} parent=39 // pred_check_branch
          %217 = sbr.rel (%p215) target = $region44
        $region43: #{tpu_custom_call.1} parent=39 // pred_region
          %218 = dma.done %s211, 7168
        $region44: #{tpu_custom_call.1} parent=39 // pred_fallthru
          _
        %s219 = sand.u32 %s27, 1
        %s220 = scalar_lea.sflag [#allocation3], %s219
        %s221 = sand.u32 %s27, 1
        %s222 = smul.addr %s221, 448
        %s223 = scalar_lea.vmem [#allocation2], %s222
        %p224 = pneg %p40
        %p225 = pneg %p37
        %p226 = pneg %p61
        %p227 = pneg %p58
        %p228 = pneg %p82
        %p229 = pneg %p79
        %p230 = pneg %p103
        %p231 = pneg %p100
        %p232 = pneg %p124
        %p233 = pneg %p121
        %p234 = pneg %p150
        %p235 = pneg %p147
        %s236 = smul.u32 16, %s19
        %p237 = scmp.lt.s32.totalorder %s236, 31
        %s238 = scalar_select %p237, %s236, 31
        %s239 = smul.addr %s238, 8
        %s240 = scalar_lea.vmem %s5, %s239
        %s241 = smul.u32 16, %s19
        %s242 = smul.u32 16, %s19
        %p243 = scmp.lt.s32.totalorder %s242, 31
        %s244 = scalar_select %p243, %s242, 31
        %s245 = smul.addr %s244, 8
        %s246 = scalar_lea.vmem %s5, %s245
        %s247 = smul.u32 16, %s19
        %v249 = vld [vmem:[%s214] sm:$0xff]
        %v250 = vld [vmem:[%s214 + $0x8] sm:$0xff]
        %v251 = vld [vmem:[%s214 + $0x10] sm:$0xff]
        %v252 = vld [vmem:[%s214 + $0x18] sm:$0xf]
        %v253 = vld [vmem:[%s214 + $0x1c] sm:$0xff]
        %v254 = vld [vmem:[%s214 + $0x24] sm:$0xff]
        %v255 = vld [vmem:[%s214 + $0x2c] sm:$0xff]
        %v256 = vld [vmem:[%s214 + $0x34] sm:$0xf]
        %v257 = vld [vmem:[%s214 + $0x38] sm:$0xff]
        %v258 = vld [vmem:[%s214 + $0x40] sm:$0xff]
        %v259 = vld [vmem:[%s214 + $0x48] sm:$0xff]
        %v260 = vld [vmem:[%s214 + $0x50] sm:$0xf]
        %v261 = vld [vmem:[%s214 + $0x54] sm:$0xff]
        %v262 = vld [vmem:[%s214 + $0x5c] sm:$0xff]
        %v263 = vld [vmem:[%s214 + $0x64] sm:$0xff]
        %v264 = vld [vmem:[%s214 + $0x6c] sm:$0xf]
        %v265 = vld [vmem:[%s214 + $0x70] sm:$0xff]
        %v266 = vld [vmem:[%s214 + $0x78] sm:$0xff]
        %v267 = vld [vmem:[%s214 + $0x80] sm:$0xff]
        %v268 = vld [vmem:[%s214 + $0x88] sm:$0xf]
        %v269 = vld [vmem:[%s214 + $0x8c] sm:$0xff]
        %v270 = vld [vmem:[%s214 + $0x94] sm:$0xff]
        %v271 = vld [vmem:[%s214 + $0x9c] sm:$0xff]
        %v272 = vld [vmem:[%s214 + $0xa4] sm:$0xf]
        %v273 = vld [vmem:[%s214 + $0xa8] sm:$0xff]
        %v274 = vld [vmem:[%s214 + $0xb0] sm:$0xff]
        %v275 = vld [vmem:[%s214 + $0xb8] sm:$0xff]
        %v276 = vld [vmem:[%s214 + $0xc0] sm:$0xf]
        %v277 = vld [vmem:[%s214 + $0xc4] sm:$0xff]
        %v278 = vld [vmem:[%s214 + $0xcc] sm:$0xff]
        %v279 = vld [vmem:[%s214 + $0xd4] sm:$0xff]
        %v280 = vld [vmem:[%s214 + $0xdc] sm:$0xf]
        %v281 = vld [vmem:[%s214 + $0xe0] sm:$0xff]
        %v282 = vld [vmem:[%s214 + $0xe8] sm:$0xff]
        %v283 = vld [vmem:[%s214 + $0xf0] sm:$0xff]
        %v284 = vld [vmem:[%s214 + $0xf8] sm:$0xf]
        %v285 = vld [vmem:[%s214 + $0xfc] sm:$0xff]
        %v286 = vld [vmem:[%s214 + $0x104] sm:$0xff]
        %v287 = vld [vmem:[%s214 + $0x10c] sm:$0xff]
        %v288 = vld [vmem:[%s214 + $0x114] sm:$0xf]
        %v289 = vld [vmem:[%s214 + $0x118] sm:$0xff]
        %v290 = vld [vmem:[%s214 + $0x120] sm:$0xff]
        %v291 = vld [vmem:[%s214 + $0x128] sm:$0xff]
        %v292 = vld [vmem:[%s214 + $0x130] sm:$0xf]
        %v293 = vld [vmem:[%s214 + $0x134] sm:$0xff]
        %v294 = vld [vmem:[%s214 + $0x13c] sm:$0xff]
        %v295 = vld [vmem:[%s214 + $0x144] sm:$0xff]
        %v296 = vld [vmem:[%s214 + $0x14c] sm:$0xf]
        %v297 = vld [vmem:[%s214 + $0x150] sm:$0xff]
        %v298 = vld [vmem:[%s214 + $0x158] sm:$0xff]
        %v299 = vld [vmem:[%s214 + $0x160] sm:$0xff]
        %v300 = vld [vmem:[%s214 + $0x168] sm:$0xf]
        %v301 = vld [vmem:[%s214 + $0x16c] sm:$0xff]
        %v302 = vld [vmem:[%s214 + $0x174] sm:$0xff]
        %v303 = vld [vmem:[%s214 + $0x17c] sm:$0xff]
        %v304 = vld [vmem:[%s214 + $0x184] sm:$0xf]
        %v305 = vld [vmem:[%s214 + $0x188] sm:$0xff]
        %v306 = vld [vmem:[%s214 + $0x190] sm:$0xff]
        %v307 = vld [vmem:[%s214 + $0x198] sm:$0xff]
        %v308 = vld [vmem:[%s214 + $0x1a0] sm:$0xf]
        %v309 = vld [vmem:[%s214 + $0x1a4] sm:$0xff]
        %v310 = vld [vmem:[%s214 + $0x1ac] sm:$0xff]
        %v311 = vld [vmem:[%s214 + $0x1b4] sm:$0xff]
        %v312 = vld [vmem:[%s214 + $0x1bc] sm:$0xf]
        %v313 = vld [vmem:[%s1] sm:$0xf]
        %v314 = vld [vmem:[%s1 + $0x4] sm:$0xf]
        %v315 = vld [vmem:[%s1 + $0x8] sm:$0xf]
        %v316 = vld [vmem:[%s1 + $0xc] sm:$0xf]
        %v317 = vld [vmem:[%s1 + $0x10] sm:$0xf]
        %v318 = vld [vmem:[%s1 + $0x14] sm:$0xf]
        %v319 = vld [vmem:[%s1 + $0x18] sm:$0xf]
        %v320 = vld [vmem:[%s1 + $0x1c] sm:$0xf]
        %v321 = vld [vmem:[%s1 + $0x20] sm:$0xf]
        %v322 = vld [vmem:[%s1 + $0x24] sm:$0xf]
        %v323 = vld [vmem:[%s1 + $0x28] sm:$0xf]
        %v324 = vld [vmem:[%s1 + $0x2c] sm:$0xf]
        %v325 = vld [vmem:[%s1 + $0x30] sm:$0xf]
        %v326 = vld [vmem:[%s1 + $0x34] sm:$0xf]
        %v327 = vld [vmem:[%s1 + $0x38] sm:$0xf]
        %v328 = vld [vmem:[%s1 + $0x3c] sm:$0xf]
        %v329 = vld [vmem:[%s1 + $0x40] sm:$0xf]
        %v330 = vld [vmem:[%s1 + $0x44] sm:$0xf]
        %v331 = vld [vmem:[%s1 + $0x48] sm:$0xf]
        %v332 = vld [vmem:[%s1 + $0x4c] sm:$0xf]
        %v333 = vld [vmem:[%s1 + $0x50] sm:$0xf]
        %v334 = vld [vmem:[%s1 + $0x54] sm:$0xf]
        %v335 = vld [vmem:[%s1 + $0x58] sm:$0xf]
        %v336 = vld [vmem:[%s1 + $0x5c] sm:$0xf]
        %v337 = vld [vmem:[%s1 + $0x60] sm:$0xf]
        %v338 = vld [vmem:[%s1 + $0x64] sm:$0xf]
        %v339 = vld [vmem:[%s1 + $0x68] sm:$0xf]
        %v340 = vld [vmem:[%s1 + $0x6c] sm:$0xf]
        %v341 = vld [vmem:[%s1 + $0x70] sm:$0xf]
        %v342 = vld [vmem:[%s1 + $0x74] sm:$0xf]
        %v343 = vld [vmem:[%s1 + $0x78] sm:$0xf]
        %v344 = vld [vmem:[%s1 + $0x7c] sm:$0xf]
        %v345 = vld [vmem:[%s1 + $0x80] sm:$0xf]
        %v346 = vld [vmem:[%s1 + $0x84] sm:$0xf]
        %v347 = vld [vmem:[%s1 + $0x88] sm:$0xf]
        %v348 = vld [vmem:[%s1 + $0x8c] sm:$0xf]
        %v349 = vld [vmem:[%s1 + $0x90] sm:$0xf]
        %v350 = vld [vmem:[%s1 + $0x94] sm:$0xf]
        %v351 = vld [vmem:[%s1 + $0x98] sm:$0xf]
        %v352 = vld [vmem:[%s1 + $0x9c] sm:$0xf]
        %v353 = vld [vmem:[%s1 + $0xa0] sm:$0xf]
        %v354 = vld [vmem:[%s1 + $0xa4] sm:$0xf]
        %v355 = vld [vmem:[%s1 + $0xa8] sm:$0xf]
        %v356 = vld [vmem:[%s1 + $0xac] sm:$0xf]
        %v357 = vld [vmem:[%s1 + $0xb0] sm:$0xf]
        %v358 = vld [vmem:[%s1 + $0xb4] sm:$0xf]
        %v359 = vld [vmem:[%s1 + $0xb8] sm:$0xf]
        %v360 = vld [vmem:[%s1 + $0xbc] sm:$0xf]
        %v361 = vld [vmem:[%s1 + $0xc0] sm:$0xf]
        %v362 = vld [vmem:[%s1 + $0xc4] sm:$0xf]
        %v363 = vld [vmem:[%s1 + $0xc8] sm:$0xf]
        %v364 = vld [vmem:[%s1 + $0xcc] sm:$0xf]
        %v365 = vld [vmem:[%s1 + $0xd0] sm:$0xf]
        %v366 = vld [vmem:[%s1 + $0xd4] sm:$0xf]
        %v367 = vld [vmem:[%s1 + $0xd8] sm:$0xf]
        %v368 = vld [vmem:[%s1 + $0xdc] sm:$0xf]
        %v369 = vld [vmem:[%s1 + $0xe0] sm:$0xf]
        %v370 = vld [vmem:[%s1 + $0xe4] sm:$0xf]
        %v371 = vld [vmem:[%s1 + $0xe8] sm:$0xf]
        %v372 = vld [vmem:[%s1 + $0xec] sm:$0xf]
        %v373 = vld [vmem:[%s1 + $0xf0] sm:$0xf]
        %v374 = vld [vmem:[%s1 + $0xf4] sm:$0xf]
        %v375 = vld [vmem:[%s1 + $0xf8] sm:$0xf]
        %v376 = vld [vmem:[%s1 + $0xfc] sm:$0xf]
        %v377 = vld [vmem:[%s1 + $0x100] sm:$0xf]
        %v378 = vld [vmem:[%s1 + $0x104] sm:$0xf]
        %v379 = vld [vmem:[%s1 + $0x108] sm:$0xf]
        %v380 = vld [vmem:[%s1 + $0x10c] sm:$0xf]
        %v381 = vld [vmem:[%s1 + $0x110] sm:$0xf]
        %v382 = vld [vmem:[%s1 + $0x114] sm:$0xf]
        %v383 = vld [vmem:[%s1 + $0x118] sm:$0xf]
        %v384 = vld [vmem:[%s1 + $0x11c] sm:$0xf]
        %v385 = vld [vmem:[%s1 + $0x120] sm:$0xf]
        %v386 = vld [vmem:[%s1 + $0x124] sm:$0xf]
        %v387 = vld [vmem:[%s1 + $0x128] sm:$0xf]
        %v388 = vld [vmem:[%s1 + $0x12c] sm:$0xf]
        %v389 = vld [vmem:[%s1 + $0x130] sm:$0xf]
        %v390 = vld [vmem:[%s1 + $0x134] sm:$0xf]
        %v391 = vld [vmem:[%s1 + $0x138] sm:$0xf]
        %v392 = vld [vmem:[%s1 + $0x13c] sm:$0xf]
        %v393 = vld [vmem:[%s1 + $0x140] sm:$0xf]
        %v394 = vld [vmem:[%s1 + $0x144] sm:$0xf]
        %v395 = vld [vmem:[%s1 + $0x148] sm:$0xf]
        %v396 = vld [vmem:[%s1 + $0x14c] sm:$0xf]
        %v397 = vld [vmem:[%s1 + $0x150] sm:$0xf]
        %v398 = vld [vmem:[%s1 + $0x154] sm:$0xf]
        %v399 = vld [vmem:[%s1 + $0x158] sm:$0xf]
        %v400 = vld [vmem:[%s1 + $0x15c] sm:$0xf]
        %v401 = vld [vmem:[%s1 + $0x160] sm:$0xf]
        %v402 = vld [vmem:[%s1 + $0x164] sm:$0xf]
        %v403 = vld [vmem:[%s1 + $0x168] sm:$0xf]
        %v404 = vld [vmem:[%s1 + $0x16c] sm:$0xf]
        %v405 = vld [vmem:[%s1 + $0x170] sm:$0xf]
        %v406 = vld [vmem:[%s1 + $0x174] sm:$0xf]
        %v407 = vld [vmem:[%s1 + $0x178] sm:$0xf]
        %v408 = vld [vmem:[%s1 + $0x17c] sm:$0xf]
        %v409 = vld [vmem:[%s1 + $0x180] sm:$0xf]
        %v410 = vld [vmem:[%s1 + $0x184] sm:$0xf]
        %v411 = vld [vmem:[%s1 + $0x188] sm:$0xf]
        %v412 = vld [vmem:[%s1 + $0x18c] sm:$0xf]
        %v413 = vld [vmem:[%s1 + $0x190] sm:$0xf]
        %v414 = vld [vmem:[%s1 + $0x194] sm:$0xf]
        %v415 = vld [vmem:[%s1 + $0x198] sm:$0xf]
        %v416 = vld [vmem:[%s1 + $0x19c] sm:$0xf]
        %v417 = vld [vmem:[%s1 + $0x1a0] sm:$0xf]
        %v418 = vld [vmem:[%s1 + $0x1a4] sm:$0xf]
        %v419 = vld [vmem:[%s1 + $0x1a8] sm:$0xf]
        %v420 = vld [vmem:[%s1 + $0x1ac] sm:$0xf]
        %v421 = vld [vmem:[%s1 + $0x1b0] sm:$0xf]
        %v422 = vld [vmem:[%s1 + $0x1b4] sm:$0xf]
        %v423 = vld [vmem:[%s1 + $0x1b8] sm:$0xf]
        %v424 = vld [vmem:[%s1 + $0x1bc] sm:$0xf]
        %v425 = vld [vmem:[%s2] sm:$0x1]
        %v427 = vlaneseq
        %v428 = vshrl.u32 %v427, 7
        %v429 = vsub.s32 0, %v428
        %v430 = vrot.slane %v425, %v429
        %v496 = vunpack.c.l.b16 %v249
        %v497 = vunpack.c.h.b16 %v249
        %v498 = vunpack.c.l.b16 %v250
        %v499 = vunpack.c.h.b16 %v250
        %v500 = vunpack.c.l.b16 %v251
        %v501 = vunpack.c.h.b16 %v251
        %v502 = vunpack.c.l.b16 %v252
        %v503 = vunpack.c.l.b16 %v253
        %v504 = vunpack.c.h.b16 %v253
        %v505 = vunpack.c.l.b16 %v254
        %v506 = vunpack.c.h.b16 %v254
        %v507 = vunpack.c.l.b16 %v255
        %v508 = vunpack.c.h.b16 %v255
        %v509 = vunpack.c.l.b16 %v256
        %v510 = vunpack.c.l.b16 %v257
        %v511 = vunpack.c.h.b16 %v257
        %v512 = vunpack.c.l.b16 %v258
        %v513 = vunpack.c.h.b16 %v258
        %v514 = vunpack.c.l.b16 %v259
        %v515 = vunpack.c.h.b16 %v259
        %v516 = vunpack.c.l.b16 %v260
        %v517 = vunpack.c.l.b16 %v261
        %v518 = vunpack.c.h.b16 %v261
        %v519 = vunpack.c.l.b16 %v262
        %v520 = vunpack.c.h.b16 %v262
        %v521 = vunpack.c.l.b16 %v263
        %v522 = vunpack.c.h.b16 %v263
        %v523 = vunpack.c.l.b16 %v264
        %v524 = vunpack.c.l.b16 %v265
        %v525 = vunpack.c.h.b16 %v265
        %v526 = vunpack.c.l.b16 %v266
        %v527 = vunpack.c.h.b16 %v266
        %v528 = vunpack.c.l.b16 %v267
        %v529 = vunpack.c.h.b16 %v267
        %v530 = vunpack.c.l.b16 %v268
        %v531 = vunpack.c.l.b16 %v269
        %v532 = vunpack.c.h.b16 %v269
        %v533 = vunpack.c.l.b16 %v270
        %v534 = vunpack.c.h.b16 %v270
        %v535 = vunpack.c.l.b16 %v271
        %v536 = vunpack.c.h.b16 %v271
        %v537 = vunpack.c.l.b16 %v272
        %v538 = vunpack.c.l.b16 %v273
        %v539 = vunpack.c.h.b16 %v273
        %v540 = vunpack.c.l.b16 %v274
        %v541 = vunpack.c.h.b16 %v274
        %v542 = vunpack.c.l.b16 %v275
        %v543 = vunpack.c.h.b16 %v275
        %v544 = vunpack.c.l.b16 %v276
        %v545 = vunpack.c.l.b16 %v277
        %v546 = vunpack.c.h.b16 %v277
        %v547 = vunpack.c.l.b16 %v278
        %v548 = vunpack.c.h.b16 %v278
        %v549 = vunpack.c.l.b16 %v279
        %v550 = vunpack.c.h.b16 %v279
        %v551 = vunpack.c.l.b16 %v280
        %v552 = vunpack.c.l.b16 %v281
        %v553 = vunpack.c.h.b16 %v281
        %v554 = vunpack.c.l.b16 %v282
        %v555 = vunpack.c.h.b16 %v282
        %v556 = vunpack.c.l.b16 %v283
        %v557 = vunpack.c.h.b16 %v283
        %v558 = vunpack.c.l.b16 %v284
        %v559 = vunpack.c.l.b16 %v285
        %v560 = vunpack.c.h.b16 %v285
        %v561 = vunpack.c.l.b16 %v286
        %v562 = vunpack.c.h.b16 %v286
        %v563 = vunpack.c.l.b16 %v287
        %v564 = vunpack.c.h.b16 %v287
        %v565 = vunpack.c.l.b16 %v288
        %v566 = vunpack.c.l.b16 %v289
        %v567 = vunpack.c.h.b16 %v289
        %v568 = vunpack.c.l.b16 %v290
        %v569 = vunpack.c.h.b16 %v290
        %v570 = vunpack.c.l.b16 %v291
        %v571 = vunpack.c.h.b16 %v291
        %v572 = vunpack.c.l.b16 %v292
        %v573 = vunpack.c.l.b16 %v293
        %v574 = vunpack.c.h.b16 %v293
        %v575 = vunpack.c.l.b16 %v294
        %v576 = vunpack.c.h.b16 %v294
        %v577 = vunpack.c.l.b16 %v295
        %v578 = vunpack.c.h.b16 %v295
        %v579 = vunpack.c.l.b16 %v296
        %v580 = vunpack.c.l.b16 %v297
        %v581 = vunpack.c.h.b16 %v297
        %v582 = vunpack.c.l.b16 %v298
        %v583 = vunpack.c.h.b16 %v298
        %v584 = vunpack.c.l.b16 %v299
        %v585 = vunpack.c.h.b16 %v299
        %v586 = vunpack.c.l.b16 %v300
        %v587 = vunpack.c.l.b16 %v301
        %v588 = vunpack.c.h.b16 %v301
        %v589 = vunpack.c.l.b16 %v302
        %v590 = vunpack.c.h.b16 %v302
        %v591 = vunpack.c.l.b16 %v303
        %v592 = vunpack.c.h.b16 %v303
        %v593 = vunpack.c.l.b16 %v304
        %v594 = vunpack.c.l.b16 %v305
        %v595 = vunpack.c.h.b16 %v305
        %v596 = vunpack.c.l.b16 %v306
        %v597 = vunpack.c.h.b16 %v306
        %v598 = vunpack.c.l.b16 %v307
        %v599 = vunpack.c.h.b16 %v307
        %v600 = vunpack.c.l.b16 %v308
        %v601 = vunpack.c.l.b16 %v309
        %v602 = vunpack.c.h.b16 %v309
        %v603 = vunpack.c.l.b16 %v310
        %v604 = vunpack.c.h.b16 %v310
        %v605 = vunpack.c.l.b16 %v311
        %v606 = vunpack.c.h.b16 %v311
        %v607 = vunpack.c.l.b16 %v312
        %v608 = vpack.c.b16 %v503, %v496
        %v609 = vpack.c.b16 %v504, %v497
        %v610 = vpack.c.b16 %v505, %v498
        %v611 = vpack.c.b16 %v506, %v499
        %v612 = vpack.c.b16 %v507, %v500
        %v613 = vpack.c.b16 %v508, %v501
        %v614 = vpack.c.b16 %v509, %v502
        %v615 = vpack.c.b16 %v517, %v510
        %v616 = vpack.c.b16 %v518, %v511
        %v617 = vpack.c.b16 %v519, %v512
        %v618 = vpack.c.b16 %v520, %v513
        %v619 = vpack.c.b16 %v521, %v514
        %v620 = vpack.c.b16 %v522, %v515
        %v621 = vpack.c.b16 %v523, %v516
        %v622 = vpack.c.b16 %v531, %v524
        %v623 = vpack.c.b16 %v532, %v525
        %v624 = vpack.c.b16 %v533, %v526
        %v625 = vpack.c.b16 %v534, %v527
        %v626 = vpack.c.b16 %v535, %v528
        %v627 = vpack.c.b16 %v536, %v529
        %v628 = vpack.c.b16 %v537, %v530
        %v629 = vpack.c.b16 %v545, %v538
        %v630 = vpack.c.b16 %v546, %v539
        %v631 = vpack.c.b16 %v547, %v540
        %v632 = vpack.c.b16 %v548, %v541
        %v633 = vpack.c.b16 %v549, %v542
        %v634 = vpack.c.b16 %v550, %v543
        %v635 = vpack.c.b16 %v551, %v544
        %v636 = vpack.c.b16 %v559, %v552
        %v637 = vpack.c.b16 %v560, %v553
        %v638 = vpack.c.b16 %v561, %v554
        %v639 = vpack.c.b16 %v562, %v555
        %v640 = vpack.c.b16 %v563, %v556
        %v641 = vpack.c.b16 %v564, %v557
        %v642 = vpack.c.b16 %v565, %v558
        %v643 = vpack.c.b16 %v573, %v566
        %v644 = vpack.c.b16 %v574, %v567
        %v645 = vpack.c.b16 %v575, %v568
        %v646 = vpack.c.b16 %v576, %v569
        %v647 = vpack.c.b16 %v577, %v570
        %v648 = vpack.c.b16 %v578, %v571
        %v649 = vpack.c.b16 %v579, %v572
        %v650 = vpack.c.b16 %v587, %v580
        %v651 = vpack.c.b16 %v588, %v581
        %v652 = vpack.c.b16 %v589, %v582
        %v653 = vpack.c.b16 %v590, %v583
        %v654 = vpack.c.b16 %v591, %v584
        %v655 = vpack.c.b16 %v592, %v585
        %v656 = vpack.c.b16 %v593, %v586
        %v657 = vpack.c.b16 %v601, %v594
        %v658 = vpack.c.b16 %v602, %v595
        %v659 = vpack.c.b16 %v603, %v596
        %v660 = vpack.c.b16 %v604, %v597
        %v661 = vpack.c.b16 %v605, %v598
        %v662 = vpack.c.b16 %v606, %v599
        %v663 = vpack.c.b16 %v607, %v600
        %v832 = vunpack.c.l.b16 %v313
        %v833 = vunpack.c.l.b16 %v314
        %v834 = vunpack.c.l.b16 %v315
        %v835 = vunpack.c.l.b16 %v316
        %v836 = vunpack.c.l.b16 %v317
        %v837 = vunpack.c.l.b16 %v318
        %v838 = vunpack.c.l.b16 %v319
        %v839 = vunpack.c.l.b16 %v320
        %v840 = vunpack.c.l.b16 %v321
        %v841 = vunpack.c.l.b16 %v322
        %v842 = vunpack.c.l.b16 %v323
        %v843 = vunpack.c.l.b16 %v324
        %v844 = vunpack.c.l.b16 %v325
        %v845 = vunpack.c.l.b16 %v326
        %v846 = vunpack.c.l.b16 %v327
        %v847 = vunpack.c.l.b16 %v328
        %v848 = vunpack.c.l.b16 %v329
        %v849 = vunpack.c.l.b16 %v330
        %v850 = vunpack.c.l.b16 %v331
        %v851 = vunpack.c.l.b16 %v332
        %v852 = vunpack.c.l.b16 %v333
        %v853 = vunpack.c.l.b16 %v334
        %v854 = vunpack.c.l.b16 %v335
        %v855 = vunpack.c.l.b16 %v336
        %v856 = vunpack.c.l.b16 %v337
        %v857 = vunpack.c.l.b16 %v338
        %v858 = vunpack.c.l.b16 %v339
        %v859 = vunpack.c.l.b16 %v340
        %v860 = vunpack.c.l.b16 %v341
        %v861 = vunpack.c.l.b16 %v342
        %v862 = vunpack.c.l.b16 %v343
        %v863 = vunpack.c.l.b16 %v344
        %v864 = vunpack.c.l.b16 %v345
        %v865 = vunpack.c.l.b16 %v346
        %v866 = vunpack.c.l.b16 %v347
        %v867 = vunpack.c.l.b16 %v348
        %v868 = vunpack.c.l.b16 %v349
        %v869 = vunpack.c.l.b16 %v350
        %v870 = vunpack.c.l.b16 %v351
        %v871 = vunpack.c.l.b16 %v352
        %v872 = vunpack.c.l.b16 %v353
        %v873 = vunpack.c.l.b16 %v354
        %v874 = vunpack.c.l.b16 %v355
        %v875 = vunpack.c.l.b16 %v356
        %v876 = vunpack.c.l.b16 %v357
        %v877 = vunpack.c.l.b16 %v358
        %v878 = vunpack.c.l.b16 %v359
        %v879 = vunpack.c.l.b16 %v360
        %v880 = vunpack.c.l.b16 %v361
        %v881 = vunpack.c.l.b16 %v362
        %v882 = vunpack.c.l.b16 %v363
        %v883 = vunpack.c.l.b16 %v364
        %v884 = vunpack.c.l.b16 %v365
        %v885 = vunpack.c.l.b16 %v366
        %v886 = vunpack.c.l.b16 %v367
        %v887 = vunpack.c.l.b16 %v368
        %v888 = vunpack.c.l.b16 %v369
        %v889 = vunpack.c.l.b16 %v370
        %v890 = vunpack.c.l.b16 %v371
        %v891 = vunpack.c.l.b16 %v372
        %v892 = vunpack.c.l.b16 %v373
        %v893 = vunpack.c.l.b16 %v374
        %v894 = vunpack.c.l.b16 %v375
        %v895 = vunpack.c.l.b16 %v376
        %v896 = vunpack.c.l.b16 %v377
        %v897 = vunpack.c.l.b16 %v378
        %v898 = vunpack.c.l.b16 %v379
        %v899 = vunpack.c.l.b16 %v380
        %v900 = vunpack.c.l.b16 %v381
        %v901 = vunpack.c.l.b16 %v382
        %v902 = vunpack.c.l.b16 %v383
        %v903 = vunpack.c.l.b16 %v384
        %v904 = vunpack.c.l.b16 %v385
        %v905 = vunpack.c.l.b16 %v386
        %v906 = vunpack.c.l.b16 %v387
        %v907 = vunpack.c.l.b16 %v388
        %v908 = vunpack.c.l.b16 %v389
        %v909 = vunpack.c.l.b16 %v390
        %v910 = vunpack.c.l.b16 %v391
        %v911 = vunpack.c.l.b16 %v392
        %v912 = vunpack.c.l.b16 %v393
        %v913 = vunpack.c.l.b16 %v394
        %v914 = vunpack.c.l.b16 %v395
        %v915 = vunpack.c.l.b16 %v396
        %v916 = vunpack.c.l.b16 %v397
        %v917 = vunpack.c.l.b16 %v398
        %v918 = vunpack.c.l.b16 %v399
        %v919 = vunpack.c.l.b16 %v400
        %v920 = vunpack.c.l.b16 %v401
        %v921 = vunpack.c.l.b16 %v402
        %v922 = vunpack.c.l.b16 %v403
        %v923 = vunpack.c.l.b16 %v404
        %v924 = vunpack.c.l.b16 %v405
        %v925 = vunpack.c.l.b16 %v406
        %v926 = vunpack.c.l.b16 %v407
        %v927 = vunpack.c.l.b16 %v408
        %v928 = vunpack.c.l.b16 %v409
        %v929 = vunpack.c.l.b16 %v410
        %v930 = vunpack.c.l.b16 %v411
        %v931 = vunpack.c.l.b16 %v412
        %v932 = vunpack.c.l.b16 %v413
        %v933 = vunpack.c.l.b16 %v414
        %v934 = vunpack.c.l.b16 %v415
        %v935 = vunpack.c.l.b16 %v416
        %v936 = vunpack.c.l.b16 %v417
        %v937 = vunpack.c.l.b16 %v418
        %v938 = vunpack.c.l.b16 %v419
        %v939 = vunpack.c.l.b16 %v420
        %v940 = vunpack.c.l.b16 %v421
        %v941 = vunpack.c.l.b16 %v422
        %v942 = vunpack.c.l.b16 %v423
        %v943 = vunpack.c.l.b16 %v424
        %v944 = vpack.c.b16 %v833, %v832
        %v945 = vpack.c.b16 %v835, %v834
        %v946 = vpack.c.b16 %v837, %v836
        %v947 = vpack.c.b16 %v839, %v838
        %v948 = vpack.c.b16 %v841, %v840
        %v949 = vpack.c.b16 %v843, %v842
        %v950 = vpack.c.b16 %v845, %v844
        %v951 = vpack.c.b16 %v847, %v846
        %v952 = vpack.c.b16 %v849, %v848
        %v953 = vpack.c.b16 %v851, %v850
        %v954 = vpack.c.b16 %v853, %v852
        %v955 = vpack.c.b16 %v855, %v854
        %v956 = vpack.c.b16 %v857, %v856
        %v957 = vpack.c.b16 %v859, %v858
        %v958 = vpack.c.b16 %v861, %v860
        %v959 = vpack.c.b16 %v863, %v862
        %v960 = vpack.c.b16 %v865, %v864
        %v961 = vpack.c.b16 %v867, %v866
        %v962 = vpack.c.b16 %v869, %v868
        %v963 = vpack.c.b16 %v871, %v870
        %v964 = vpack.c.b16 %v873, %v872
        %v965 = vpack.c.b16 %v875, %v874
        %v966 = vpack.c.b16 %v877, %v876
        %v967 = vpack.c.b16 %v879, %v878
        %v968 = vpack.c.b16 %v881, %v880
        %v969 = vpack.c.b16 %v883, %v882
        %v970 = vpack.c.b16 %v885, %v884
        %v971 = vpack.c.b16 %v887, %v886
        %v972 = vpack.c.b16 %v889, %v888
        %v973 = vpack.c.b16 %v891, %v890
        %v974 = vpack.c.b16 %v893, %v892
        %v975 = vpack.c.b16 %v895, %v894
        %v976 = vpack.c.b16 %v897, %v896
        %v977 = vpack.c.b16 %v899, %v898
        %v978 = vpack.c.b16 %v901, %v900
        %v979 = vpack.c.b16 %v903, %v902
        %v980 = vpack.c.b16 %v905, %v904
        %v981 = vpack.c.b16 %v907, %v906
        %v982 = vpack.c.b16 %v909, %v908
        %v983 = vpack.c.b16 %v911, %v910
        %v984 = vpack.c.b16 %v913, %v912
        %v985 = vpack.c.b16 %v915, %v914
        %v986 = vpack.c.b16 %v917, %v916
        %v987 = vpack.c.b16 %v919, %v918
        %v988 = vpack.c.b16 %v921, %v920
        %v989 = vpack.c.b16 %v923, %v922
        %v990 = vpack.c.b16 %v925, %v924
        %v991 = vpack.c.b16 %v927, %v926
        %v992 = vpack.c.b16 %v929, %v928
        %v993 = vpack.c.b16 %v931, %v930
        %v994 = vpack.c.b16 %v933, %v932
        %v995 = vpack.c.b16 %v935, %v934
        %v996 = vpack.c.b16 %v937, %v936
        %v997 = vpack.c.b16 %v939, %v938
        %v998 = vpack.c.b16 %v941, %v940
        %v999 = vpack.c.b16 %v943, %v942
        %1056 = vmatprep.subr.bf16.mxu0 0
        %1057 = vmatpush1.bf16.msra.mxu0 %v951
        %1058 = vmatprep.subr.bf16.mxu0 0
        %1059 = vmatpush1.bf16.msra.mxu0 %v950
        %1060 = vmatprep.subr.bf16.mxu0 0
        %1061 = vmatpush1.bf16.msra.mxu0 %v949
        %1062 = vmatprep.subr.bf16.mxu0 0
        %1063 = vmatpush1.bf16.msra.mxu0 %v948
        %1064 = vmatprep.subr.bf16.mxu0 0
        %1065 = vmatpush1.bf16.msra.mxu0 %v947
        %1066 = vmatprep.subr.bf16.mxu0 0
        %1067 = vmatpush1.bf16.msra.mxu0 %v946
        %1068 = vmatprep.subr.bf16.mxu0 0
        %1069 = vmatpush1.bf16.msra.mxu0 %v945
        %1070 = vmatprep.subr.bf16.mxu0 0
        %1071 = vmatpush1.bf16.msra.mxu0 %v944
        %1072 = vmatprep.subr.bf16.mxu0 0
        %1073 = vmatpush2.bf16.msra.mxu0 %v959
        %1074 = vmatprep.subr.bf16.mxu0 0
        %1075 = vmatpush2.bf16.msra.mxu0 %v958
        %1076 = vmatprep.subr.bf16.mxu0 0
        %1077 = vmatpush2.bf16.msra.mxu0 %v957
        %1078 = vmatprep.subr.bf16.mxu0 0
        %1079 = vmatpush2.bf16.msra.mxu0 %v956
        %1080 = vmatprep.subr.bf16.mxu0 0
        %1081 = vmatpush2.bf16.msra.mxu0 %v955
        %1082 = vmatprep.subr.bf16.mxu0 0
        %1083 = vmatpush2.bf16.msra.mxu0 %v954
        %1084 = vmatprep.subr.bf16.mxu0 0
        %1085 = vmatpush2.bf16.msra.mxu0 %v953
        %1086 = vmatprep.subr.bf16.mxu0 0
        %1087 = vmatpush2.bf16.msra.mxu0 %v952
        %1088 = vmatprep.mubr.bf16.mxu0 %v609
        %1089 = vmatmul.mubr.bf16.gmra.mxu0 %v608
        %v1090 = vpop.f32.mrf.mxu0
        %v1091 = vadd.f32 %v430, %v1090
        %v1092 = vpop.f32.mrf.mxu0
        %v1093 = vpop.f32.mrf.mxu0
        %v1094 = vadd.f32 %v430, %v1093
        %v1095 = vpop.f32.mrf.mxu0
        %1096 = vmatprep.mubr.bf16.mxu0 %v616
        %1097 = vmatmul.mubr.bf16.gmra.mxu0 %v615
        %v1098 = vpop.f32.mrf.mxu0
        %v1099 = vadd.f32 %v430, %v1098
        %v1100 = vpop.f32.mrf.mxu0
        %v1101 = vpop.f32.mrf.mxu0
        %v1102 = vadd.f32 %v430, %v1101
        %v1103 = vpop.f32.mrf.mxu0
        %1104 = vmatprep.mubr.bf16.mxu0 %v623
        %1105 = vmatmul.mubr.bf16.gmra.mxu0 %v622
        %v1106 = vpop.f32.mrf.mxu0
        %v1107 = vadd.f32 %v430, %v1106
        %v1108 = vpop.f32.mrf.mxu0
        %v1109 = vpop.f32.mrf.mxu0
        %v1110 = vadd.f32 %v430, %v1109
        %v1111 = vpop.f32.mrf.mxu0
        %1112 = vmatprep.mubr.bf16.mxu0 %v630
        %1113 = vmatmul.mubr.bf16.gmra.mxu0 %v629
        %v1114 = vpop.f32.mrf.mxu0
        %v1115 = vadd.f32 %v430, %v1114
        %v1116 = vpop.f32.mrf.mxu0
        %v1117 = vpop.f32.mrf.mxu0
        %v1118 = vadd.f32 %v430, %v1117
        %v1119 = vpop.f32.mrf.mxu0
        %1120 = vmatprep.mubr.bf16.mxu0 %v637
        %1121 = vmatmul.mubr.bf16.gmra.mxu0 %v636
        %v1122 = vpop.f32.mrf.mxu0
        %v1123 = vadd.f32 %v430, %v1122
        %v1124 = vpop.f32.mrf.mxu0
        %v1125 = vpop.f32.mrf.mxu0
        %v1126 = vadd.f32 %v430, %v1125
        %v1127 = vpop.f32.mrf.mxu0
        %1128 = vmatprep.mubr.bf16.mxu0 %v644
        %1129 = vmatmul.mubr.bf16.gmra.mxu0 %v643
        %v1130 = vpop.f32.mrf.mxu0
        %v1131 = vadd.f32 %v430, %v1130
        %v1132 = vpop.f32.mrf.mxu0
        %v1133 = vpop.f32.mrf.mxu0
        %v1134 = vadd.f32 %v430, %v1133
        %v1135 = vpop.f32.mrf.mxu0
        %1136 = vmatprep.mubr.bf16.mxu0 %v651
        %1137 = vmatmul.mubr.bf16.gmra.mxu0 %v650
        %v1138 = vpop.f32.mrf.mxu0
        %v1139 = vadd.f32 %v430, %v1138
        %v1140 = vpop.f32.mrf.mxu0
        %v1141 = vpop.f32.mrf.mxu0
        %v1142 = vadd.f32 %v430, %v1141
        %v1143 = vpop.f32.mrf.mxu0
        %1144 = vmatprep.mubr.bf16.mxu0 %v658
        %1145 = vmatmul.mubr.bf16.gmra.mxu0 %v657
        %v1146 = vpop.f32.mrf.mxu0
        %v1147 = vadd.f32 %v430, %v1146
        %v1148 = vpop.f32.mrf.mxu0
        %v1149 = vpop.f32.mrf.mxu0
        %v1150 = vadd.f32 %v430, %v1149
        %v1151 = vpop.f32.mrf.mxu0
        %1152 = vdwg.mxu0
        %1153 = vmatprep.subr.bf16.mxu0 0
        %1154 = vmatpush1.bf16.msra.mxu0 %v967
        %1155 = vmatprep.subr.bf16.mxu0 0
        %1156 = vmatpush1.bf16.msra.mxu0 %v966
        %1157 = vmatprep.subr.bf16.mxu0 0
        %1158 = vmatpush1.bf16.msra.mxu0 %v965
        %1159 = vmatprep.subr.bf16.mxu0 0
        %1160 = vmatpush1.bf16.msra.mxu0 %v964
        %1161 = vmatprep.subr.bf16.mxu0 0
        %1162 = vmatpush1.bf16.msra.mxu0 %v963
        %1163 = vmatprep.subr.bf16.mxu0 0
        %1164 = vmatpush1.bf16.msra.mxu0 %v962
        %1165 = vmatprep.subr.bf16.mxu0 0
        %1166 = vmatpush1.bf16.msra.mxu0 %v961
        %1167 = vmatprep.subr.bf16.mxu0 0
        %1168 = vmatpush1.bf16.msra.mxu0 %v960
        %1169 = vmatprep.subr.bf16.mxu0 0
        %1170 = vmatpush2.bf16.msra.mxu0 %v975
        %1171 = vmatprep.subr.bf16.mxu0 0
        %1172 = vmatpush2.bf16.msra.mxu0 %v974
        %1173 = vmatprep.subr.bf16.mxu0 0
        %1174 = vmatpush2.bf16.msra.mxu0 %v973
        %1175 = vmatprep.subr.bf16.mxu0 0
        %1176 = vmatpush2.bf16.msra.mxu0 %v972
        %1177 = vmatprep.subr.bf16.mxu0 0
        %1178 = vmatpush2.bf16.msra.mxu0 %v971
        %1179 = vmatprep.subr.bf16.mxu0 0
        %1180 = vmatpush2.bf16.msra.mxu0 %v970
        %1181 = vmatprep.subr.bf16.mxu0 0
        %1182 = vmatpush2.bf16.msra.mxu0 %v969
        %1183 = vmatprep.subr.bf16.mxu0 0
        %1184 = vmatpush2.bf16.msra.mxu0 %v968
        %1185 = vmatprep.mubr.bf16.mxu0 %v611
        %1186 = vmatmul.mubr.bf16.gmra.mxu0 %v610
        %v1187 = vpop.f32.mrf.mxu0
        %v1188 = vadd.f32 %v1091, %v1187
        %v1189 = vpop.f32.mrf.mxu0
        %v1190 = vpop.f32.mrf.mxu0
        %v1191 = vadd.f32 %v1094, %v1190
        %v1192 = vpop.f32.mrf.mxu0
        %1193 = vmatprep.mubr.bf16.mxu0 %v618
        %1194 = vmatmul.mubr.bf16.gmra.mxu0 %v617
        %v1195 = vpop.f32.mrf.mxu0
        %v1196 = vadd.f32 %v1099, %v1195
        %v1197 = vpop.f32.mrf.mxu0
        %v1198 = vpop.f32.mrf.mxu0
        %v1199 = vadd.f32 %v1102, %v1198
        %v1200 = vpop.f32.mrf.mxu0
        %1201 = vmatprep.mubr.bf16.mxu0 %v625
        %1202 = vmatmul.mubr.bf16.gmra.mxu0 %v624
        %v1203 = vpop.f32.mrf.mxu0
        %v1204 = vadd.f32 %v1107, %v1203
        %v1205 = vpop.f32.mrf.mxu0
        %v1206 = vpop.f32.mrf.mxu0
        %v1207 = vadd.f32 %v1110, %v1206
        %v1208 = vpop.f32.mrf.mxu0
        %1209 = vmatprep.mubr.bf16.mxu0 %v632
        %1210 = vmatmul.mubr.bf16.gmra.mxu0 %v631
        %v1211 = vpop.f32.mrf.mxu0
        %v1212 = vadd.f32 %v1115, %v1211
        %v1213 = vpop.f32.mrf.mxu0
        %v1214 = vpop.f32.mrf.mxu0
        %v1215 = vadd.f32 %v1118, %v1214
        %v1216 = vpop.f32.mrf.mxu0
        %1217 = vmatprep.mubr.bf16.mxu0 %v639
        %1218 = vmatmul.mubr.bf16.gmra.mxu0 %v638
        %v1219 = vpop.f32.mrf.mxu0
        %v1220 = vadd.f32 %v1123, %v1219
        %v1221 = vpop.f32.mrf.mxu0
        %v1222 = vpop.f32.mrf.mxu0
        %v1223 = vadd.f32 %v1126, %v1222
        %v1224 = vpop.f32.mrf.mxu0
        %1225 = vmatprep.mubr.bf16.mxu0 %v646
        %1226 = vmatmul.mubr.bf16.gmra.mxu0 %v645
        %v1227 = vpop.f32.mrf.mxu0
        %v1228 = vadd.f32 %v1131, %v1227
        %v1229 = vpop.f32.mrf.mxu0
        %v1230 = vpop.f32.mrf.mxu0
        %v1231 = vadd.f32 %v1134, %v1230
        %v1232 = vpop.f32.mrf.mxu0
        %1233 = vmatprep.mubr.bf16.mxu0 %v653
        %1234 = vmatmul.mubr.bf16.gmra.mxu0 %v652
        %v1235 = vpop.f32.mrf.mxu0
        %v1236 = vadd.f32 %v1139, %v1235
        %v1237 = vpop.f32.mrf.mxu0
        %v1238 = vpop.f32.mrf.mxu0
        %v1239 = vadd.f32 %v1142, %v1238
        %v1240 = vpop.f32.mrf.mxu0
        %1241 = vmatprep.mubr.bf16.mxu0 %v660
        %1242 = vmatmul.mubr.bf16.gmra.mxu0 %v659
        %v1243 = vpop.f32.mrf.mxu0
        %v1244 = vadd.f32 %v1147, %v1243
        %v1245 = vpop.f32.mrf.mxu0
        %v1246 = vpop.f32.mrf.mxu0
        %v1247 = vadd.f32 %v1150, %v1246
        %v1248 = vpop.f32.mrf.mxu0
        %1249 = vdwg.mxu0
        %1250 = vmatprep.subr.bf16.mxu0 0
        %1251 = vmatpush1.bf16.msra.mxu0 %v983
        %1252 = vmatprep.subr.bf16.mxu0 0
        %1253 = vmatpush1.bf16.msra.mxu0 %v982
        %1254 = vmatprep.subr.bf16.mxu0 0
        %1255 = vmatpush1.bf16.msra.mxu0 %v981
        %1256 = vmatprep.subr.bf16.mxu0 0
        %1257 = vmatpush1.bf16.msra.mxu0 %v980
        %1258 = vmatprep.subr.bf16.mxu0 0
        %1259 = vmatpush1.bf16.msra.mxu0 %v979
        %1260 = vmatprep.subr.bf16.mxu0 0
        %1261 = vmatpush1.bf16.msra.mxu0 %v978
        %1262 = vmatprep.subr.bf16.mxu0 0
        %1263 = vmatpush1.bf16.msra.mxu0 %v977
        %1264 = vmatprep.subr.bf16.mxu0 0
        %1265 = vmatpush1.bf16.msra.mxu0 %v976
        %1266 = vmatprep.subr.bf16.mxu0 0
        %1267 = vmatpush2.bf16.msra.mxu0 %v991
        %1268 = vmatprep.subr.bf16.mxu0 0
        %1269 = vmatpush2.bf16.msra.mxu0 %v990
        %1270 = vmatprep.subr.bf16.mxu0 0
        %1271 = vmatpush2.bf16.msra.mxu0 %v989
        %1272 = vmatprep.subr.bf16.mxu0 0
        %1273 = vmatpush2.bf16.msra.mxu0 %v988
        %1274 = vmatprep.subr.bf16.mxu0 0
        %1275 = vmatpush2.bf16.msra.mxu0 %v987
        %1276 = vmatprep.subr.bf16.mxu0 0
        %1277 = vmatpush2.bf16.msra.mxu0 %v986
        %1278 = vmatprep.subr.bf16.mxu0 0
        %1279 = vmatpush2.bf16.msra.mxu0 %v985
        %1280 = vmatprep.subr.bf16.mxu0 0
        %1281 = vmatpush2.bf16.msra.mxu0 %v984
        %1282 = vmatprep.mubr.bf16.mxu0 %v613
        %1283 = vmatmul.mubr.bf16.gmra.mxu0 %v612
        %v1284 = vpop.f32.mrf.mxu0
        %v1285 = vadd.f32 %v1188, %v1284
        %v1286 = vpop.f32.mrf.mxu0
        %v1287 = vpop.f32.mrf.mxu0
        %v1288 = vadd.f32 %v1191, %v1287
        %v1289 = vpop.f32.mrf.mxu0
        %1290 = vmatprep.mubr.bf16.mxu0 %v620
        %1291 = vmatmul.mubr.bf16.gmra.mxu0 %v619
        %v1292 = vpop.f32.mrf.mxu0
        %v1293 = vadd.f32 %v1196, %v1292
        %v1294 = vpop.f32.mrf.mxu0
        %v1295 = vpop.f32.mrf.mxu0
        %v1296 = vadd.f32 %v1199, %v1295
        %v1297 = vpop.f32.mrf.mxu0
        %1298 = vmatprep.mubr.bf16.mxu0 %v627
        %1299 = vmatmul.mubr.bf16.gmra.mxu0 %v626
        %v1300 = vpop.f32.mrf.mxu0
        %v1301 = vadd.f32 %v1204, %v1300
        %v1302 = vpop.f32.mrf.mxu0
        %v1303 = vpop.f32.mrf.mxu0
        %v1304 = vadd.f32 %v1207, %v1303
        %v1305 = vpop.f32.mrf.mxu0
        %1306 = vmatprep.mubr.bf16.mxu0 %v634
        %1307 = vmatmul.mubr.bf16.gmra.mxu0 %v633
        %v1308 = vpop.f32.mrf.mxu0
        %v1309 = vadd.f32 %v1212, %v1308
        %v1310 = vpop.f32.mrf.mxu0
        %v1311 = vpop.f32.mrf.mxu0
        %v1312 = vadd.f32 %v1215, %v1311
        %v1313 = vpop.f32.mrf.mxu0
        %1314 = vmatprep.mubr.bf16.mxu0 %v641
        %1315 = vmatmul.mubr.bf16.gmra.mxu0 %v640
        %v1316 = vpop.f32.mrf.mxu0
        %v1317 = vadd.f32 %v1220, %v1316
        %v1318 = vpop.f32.mrf.mxu0
        %v1319 = vpop.f32.mrf.mxu0
        %v1320 = vadd.f32 %v1223, %v1319
        %v1321 = vpop.f32.mrf.mxu0
        %1322 = vmatprep.mubr.bf16.mxu0 %v648
        %1323 = vmatmul.mubr.bf16.gmra.mxu0 %v647
        %v1324 = vpop.f32.mrf.mxu0
        %v1325 = vadd.f32 %v1228, %v1324
        %v1326 = vpop.f32.mrf.mxu0
        %v1327 = vpop.f32.mrf.mxu0
        %v1328 = vadd.f32 %v1231, %v1327
        %v1329 = vpop.f32.mrf.mxu0
        %1330 = vmatprep.mubr.bf16.mxu0 %v655
        %1331 = vmatmul.mubr.bf16.gmra.mxu0 %v654
        %v1332 = vpop.f32.mrf.mxu0
        %v1333 = vadd.f32 %v1236, %v1332
        %v1334 = vpop.f32.mrf.mxu0
        %v1335 = vpop.f32.mrf.mxu0
        %v1336 = vadd.f32 %v1239, %v1335
        %v1337 = vpop.f32.mrf.mxu0
        %1338 = vmatprep.mubr.bf16.mxu0 %v662
        %1339 = vmatmul.mubr.bf16.gmra.mxu0 %v661
        %v1340 = vpop.f32.mrf.mxu0
        %v1341 = vadd.f32 %v1244, %v1340
        %v1342 = vpop.f32.mrf.mxu0
        %v1343 = vpop.f32.mrf.mxu0
        %v1344 = vadd.f32 %v1247, %v1343
        %v1345 = vpop.f32.mrf.mxu0
        %1346 = vdwg.mxu0
        %1347 = vmatprep.subr.bf16.mxu0 0
        %1348 = vmatpush1.bf16.msra.mxu0 %v999
        %1349 = vmatprep.subr.bf16.mxu0 0
        %1350 = vmatpush1.bf16.msra.mxu0 %v998
        %1351 = vmatprep.subr.bf16.mxu0 0
        %1352 = vmatpush1.bf16.msra.mxu0 %v997
        %1353 = vmatprep.subr.bf16.mxu0 0
        %1354 = vmatpush1.bf16.msra.mxu0 %v996
        %1355 = vmatprep.subr.bf16.mxu0 0
        %1356 = vmatpush1.bf16.msra.mxu0 %v995
        %1357 = vmatprep.subr.bf16.mxu0 0
        %1358 = vmatpush1.bf16.msra.mxu0 %v994
        %1359 = vmatprep.subr.bf16.mxu0 0
        %1360 = vmatpush1.bf16.msra.mxu0 %v993
        %1361 = vmatprep.subr.bf16.mxu0 0
        %1362 = vmatpush1.bf16.msra.mxu0 %v992
        %1363 = vmatprep.subr.bf16.mxu0 0
        %1364 = vmatpush2.bf16.msra.mxu0 0
        %1365 = vmatprep.subr.bf16.mxu0 0
        %1366 = vmatpush2.bf16.msra.mxu0 0
        %1367 = vmatprep.subr.bf16.mxu0 0
        %1368 = vmatpush2.bf16.msra.mxu0 0
        %1369 = vmatprep.subr.bf16.mxu0 0
        %1370 = vmatpush2.bf16.msra.mxu0 0
        %1371 = vmatprep.subr.bf16.mxu0 0
        %1372 = vmatpush2.bf16.msra.mxu0 0
        %1373 = vmatprep.subr.bf16.mxu0 0
        %1374 = vmatpush2.bf16.msra.mxu0 0
        %1375 = vmatprep.subr.bf16.mxu0 0
        %1376 = vmatpush2.bf16.msra.mxu0 0
        %1377 = vmatprep.subr.bf16.mxu0 0
        %1378 = vmatpush2.bf16.msra.mxu0 0
        %1379 = vmatprep.mubr.bf16.mxu0 0
        %1380 = vmatmul.mubr.bf16.gmra.mxu0 %v614
        %v1381 = vpop.f32.mrf.mxu0
        %v1382 = vadd.f32 %v1285, %v1381
        %v1383 = vpop.f32.mrf.mxu0
        %v1384 = vpop.f32.mrf.mxu0
        %v1385 = vadd.f32 %v1288, %v1384
        %v1386 = vpop.f32.mrf.mxu0
        %1387 = vmatprep.mubr.bf16.mxu0 0
        %1388 = vmatmul.mubr.bf16.gmra.mxu0 %v621
        %v1389 = vpop.f32.mrf.mxu0
        %v1390 = vadd.f32 %v1293, %v1389
        %v1391 = vpop.f32.mrf.mxu0
        %v1392 = vpop.f32.mrf.mxu0
        %v1393 = vadd.f32 %v1296, %v1392
        %v1394 = vpop.f32.mrf.mxu0
        %1395 = vmatprep.mubr.bf16.mxu0 0
        %1396 = vmatmul.mubr.bf16.gmra.mxu0 %v628
        %v1397 = vpop.f32.mrf.mxu0
        %v1398 = vadd.f32 %v1301, %v1397
        %v1399 = vpop.f32.mrf.mxu0
        %v1400 = vpop.f32.mrf.mxu0
        %v1401 = vadd.f32 %v1304, %v1400
        %v1402 = vpop.f32.mrf.mxu0
        %1403 = vmatprep.mubr.bf16.mxu0 0
        %1404 = vmatmul.mubr.bf16.gmra.mxu0 %v635
        %v1405 = vpop.f32.mrf.mxu0
        %v1406 = vadd.f32 %v1309, %v1405
        %v1407 = vpop.f32.mrf.mxu0
        %v1408 = vpop.f32.mrf.mxu0
        %v1409 = vadd.f32 %v1312, %v1408
        %v1410 = vpop.f32.mrf.mxu0
        %1411 = vmatprep.mubr.bf16.mxu0 0
        %1412 = vmatmul.mubr.bf16.gmra.mxu0 %v642
        %v1413 = vpop.f32.mrf.mxu0
        %v1414 = vadd.f32 %v1317, %v1413
        %v1415 = vpop.f32.mrf.mxu0
        %v1416 = vpop.f32.mrf.mxu0
        %v1417 = vadd.f32 %v1320, %v1416
        %v1418 = vpop.f32.mrf.mxu0
        %1419 = vmatprep.mubr.bf16.mxu0 0
        %1420 = vmatmul.mubr.bf16.gmra.mxu0 %v649
        %v1421 = vpop.f32.mrf.mxu0
        %v1422 = vadd.f32 %v1325, %v1421
        %v1423 = vpop.f32.mrf.mxu0
        %v1424 = vpop.f32.mrf.mxu0
        %v1425 = vadd.f32 %v1328, %v1424
        %v1426 = vpop.f32.mrf.mxu0
        %1427 = vmatprep.mubr.bf16.mxu0 0
        %1428 = vmatmul.mubr.bf16.gmra.mxu0 %v656
        %v1429 = vpop.f32.mrf.mxu0
        %v1430 = vadd.f32 %v1333, %v1429
        %v1431 = vpop.f32.mrf.mxu0
        %v1432 = vpop.f32.mrf.mxu0
        %v1433 = vadd.f32 %v1336, %v1432
        %v1434 = vpop.f32.mrf.mxu0
        %1435 = vmatprep.mubr.bf16.mxu0 0
        %1436 = vmatmul.mubr.bf16.gmra.mxu0 %v663
        %v1437 = vpop.f32.mrf.mxu0
        %v1438 = vadd.f32 %v1341, %v1437
        %v1439 = vpop.f32.mrf.mxu0
        %v1440 = vpop.f32.mrf.mxu0
        %v1441 = vadd.f32 %v1344, %v1440
        %v1442 = vpop.f32.mrf.mxu0
        %1443 = vdwg.mxu0
        %vm1444 = vcmp.gt.f32.partialorder %v1382, 20.0
        %vm1445 = vcmp.gt.f32.partialorder %v1385, 20.0
        %vm1446 = vcmp.gt.f32.partialorder %v1390, 20.0
        %vm1447 = vcmp.gt.f32.partialorder %v1393, 20.0
        %vm1448 = vcmp.gt.f32.partialorder %v1398, 20.0
        %vm1449 = vcmp.gt.f32.partialorder %v1401, 20.0
        %vm1450 = vcmp.gt.f32.partialorder %v1406, 20.0
        %vm1451 = vcmp.gt.f32.partialorder %v1409, 20.0
        %vm1452 = vcmp.gt.f32.partialorder %v1414, 20.0
        %vm1453 = vcmp.gt.f32.partialorder %v1417, 20.0
        %vm1454 = vcmp.gt.f32.partialorder %v1422, 20.0
        %vm1455 = vcmp.gt.f32.partialorder %v1425, 20.0
        %vm1456 = vcmp.gt.f32.partialorder %v1430, 20.0
        %vm1457 = vcmp.gt.f32.partialorder %v1433, 20.0
        %vm1458 = vcmp.gt.f32.partialorder %v1438, 20.0
        %vm1459 = vcmp.gt.f32.partialorder %v1441, 20.0
        %v1460 = vmin.f32 %v1382, 20.0
        %v1461 = vmin.f32 %v1385, 20.0
        %v1462 = vmin.f32 %v1390, 20.0
        %v1463 = vmin.f32 %v1393, 20.0
        %v1464 = vmin.f32 %v1398, 20.0
        %v1465 = vmin.f32 %v1401, 20.0
        %v1466 = vmin.f32 %v1406, 20.0
        %v1467 = vmin.f32 %v1409, 20.0
        %v1468 = vmin.f32 %v1414, 20.0
        %v1469 = vmin.f32 %v1417, 20.0
        %v1470 = vmin.f32 %v1422, 20.0
        %v1471 = vmin.f32 %v1425, 20.0
        %v1472 = vmin.f32 %v1430, 20.0
        %v1473 = vmin.f32 %v1433, 20.0
        %v1474 = vmin.f32 %v1438, 20.0
        %v1475 = vmin.f32 %v1441, 20.0
        %v1476 = vmul.f32 %v1460, 1.442695
        %v1477 = vpow.pop %v1476
        %v1478 = vmul.f32 %v1461, 1.442695
        %v1479 = vpow.pop %v1478
        %v1480 = vmul.f32 %v1462, 1.442695
        %v1481 = vpow.pop %v1480
        %v1482 = vmul.f32 %v1463, 1.442695
        %v1483 = vpow.pop %v1482
        %v1484 = vmul.f32 %v1464, 1.442695
        %v1485 = vpow.pop %v1484
        %v1486 = vmul.f32 %v1465, 1.442695
        %v1487 = vpow.pop %v1486
        %v1488 = vmul.f32 %v1466, 1.442695
        %v1489 = vpow.pop %v1488
        %v1490 = vmul.f32 %v1467, 1.442695
        %v1491 = vpow.pop %v1490
        %v1492 = vmul.f32 %v1468, 1.442695
        %v1493 = vpow.pop %v1492
        %v1494 = vmul.f32 %v1469, 1.442695
        %v1495 = vpow.pop %v1494
        %v1496 = vmul.f32 %v1470, 1.442695
        %v1497 = vpow.pop %v1496
        %v1498 = vmul.f32 %v1471, 1.442695
        %v1499 = vpow.pop %v1498
        %v1500 = vmul.f32 %v1472, 1.442695
        %v1501 = vpow.pop %v1500
        %v1502 = vmul.f32 %v1473, 1.442695
        %v1503 = vpow.pop %v1502
        %v1504 = vmul.f32 %v1474, 1.442695
        %v1505 = vpow.pop %v1504
        %v1506 = vmul.f32 %v1475, 1.442695
        %v1507 = vpow.pop %v1506
        %v1508 = vadd.f32 %v1477, 1.0
        %v1509 = vlog2.pop %v1508
        %v1510 = vmul.f32 %v1509, 0.6931472
        %v1511 = vmul.f32 -0.5, %v1477
        %v1512 = vadd.f32 %v1511, 1.0
        %v1513 = vmul.f32 %v1512, %v1477
        %v1514 = vand.u32 2147483647, %v1477
        %vm1515 = vcmp.lt.f32.partialorder %v1514, 0.0004427343
        %v1516 = vsel %vm1515, %v1513, %v1510
        %v1517 = vadd.f32 %v1479, 1.0
        %v1518 = vlog2.pop %v1517
        %v1519 = vmul.f32 %v1518, 0.6931472
        %v1520 = vmul.f32 -0.5, %v1479
        %v1521 = vadd.f32 %v1520, 1.0
        %v1522 = vmul.f32 %v1521, %v1479
        %v1523 = vand.u32 2147483647, %v1479
        %vm1524 = vcmp.lt.f32.partialorder %v1523, 0.0004427343
        %v1525 = vsel %vm1524, %v1522, %v1519
        %v1526 = vadd.f32 %v1481, 1.0
        %v1527 = vlog2.pop %v1526
        %v1528 = vmul.f32 %v1527, 0.6931472
        %v1529 = vmul.f32 -0.5, %v1481
        %v1530 = vadd.f32 %v1529, 1.0
        %v1531 = vmul.f32 %v1530, %v1481
        %v1532 = vand.u32 2147483647, %v1481
        %vm1533 = vcmp.lt.f32.partialorder %v1532, 0.0004427343
        %v1534 = vsel %vm1533, %v1531, %v1528
        %v1535 = vadd.f32 %v1483, 1.0
        %v1536 = vlog2.pop %v1535
        %v1537 = vmul.f32 %v1536, 0.6931472
        %v1538 = vmul.f32 -0.5, %v1483
        %v1539 = vadd.f32 %v1538, 1.0
        %v1540 = vmul.f32 %v1539, %v1483
        %v1541 = vand.u32 2147483647, %v1483
        %vm1542 = vcmp.lt.f32.partialorder %v1541, 0.0004427343
        %v1543 = vsel %vm1542, %v1540, %v1537
        %v1544 = vadd.f32 %v1485, 1.0
        %v1545 = vlog2.pop %v1544
        %v1546 = vmul.f32 %v1545, 0.6931472
        %v1547 = vmul.f32 -0.5, %v1485
        %v1548 = vadd.f32 %v1547, 1.0
        %v1549 = vmul.f32 %v1548, %v1485
        %v1550 = vand.u32 2147483647, %v1485
        %vm1551 = vcmp.lt.f32.partialorder %v1550, 0.0004427343
        %v1552 = vsel %vm1551, %v1549, %v1546
        %v1553 = vadd.f32 %v1487, 1.0
        %v1554 = vlog2.pop %v1553
        %v1555 = vmul.f32 %v1554, 0.6931472
        %v1556 = vmul.f32 -0.5, %v1487
        %v1557 = vadd.f32 %v1556, 1.0
        %v1558 = vmul.f32 %v1557, %v1487
        %v1559 = vand.u32 2147483647, %v1487
        %vm1560 = vcmp.lt.f32.partialorder %v1559, 0.0004427343
        %v1561 = vsel %vm1560, %v1558, %v1555
        %v1562 = vadd.f32 %v1489, 1.0
        %v1563 = vlog2.pop %v1562
        %v1564 = vmul.f32 %v1563, 0.6931472
        %v1565 = vmul.f32 -0.5, %v1489
        %v1566 = vadd.f32 %v1565, 1.0
        %v1567 = vmul.f32 %v1566, %v1489
        %v1568 = vand.u32 2147483647, %v1489
        %vm1569 = vcmp.lt.f32.partialorder %v1568, 0.0004427343
        %v1570 = vsel %vm1569, %v1567, %v1564
        %v1571 = vadd.f32 %v1491, 1.0
        %v1572 = vlog2.pop %v1571
        %v1573 = vmul.f32 %v1572, 0.6931472
        %v1574 = vmul.f32 -0.5, %v1491
        %v1575 = vadd.f32 %v1574, 1.0
        %v1576 = vmul.f32 %v1575, %v1491
        %v1577 = vand.u32 2147483647, %v1491
        %vm1578 = vcmp.lt.f32.partialorder %v1577, 0.0004427343
        %v1579 = vsel %vm1578, %v1576, %v1573
        %v1580 = vadd.f32 %v1493, 1.0
        %v1581 = vlog2.pop %v1580
        %v1582 = vmul.f32 %v1581, 0.6931472
        %v1583 = vmul.f32 -0.5, %v1493
        %v1584 = vadd.f32 %v1583, 1.0
        %v1585 = vmul.f32 %v1584, %v1493
        %v1586 = vand.u32 2147483647, %v1493
        %vm1587 = vcmp.lt.f32.partialorder %v1586, 0.0004427343
        %v1588 = vsel %vm1587, %v1585, %v1582
        %v1589 = vadd.f32 %v1495, 1.0
        %v1590 = vlog2.pop %v1589
        %v1591 = vmul.f32 %v1590, 0.6931472
        %v1592 = vmul.f32 -0.5, %v1495
        %v1593 = vadd.f32 %v1592, 1.0
        %v1594 = vmul.f32 %v1593, %v1495
        %v1595 = vand.u32 2147483647, %v1495
        %vm1596 = vcmp.lt.f32.partialorder %v1595, 0.0004427343
        %v1597 = vsel %vm1596, %v1594, %v1591
        %v1598 = vadd.f32 %v1497, 1.0
        %v1599 = vlog2.pop %v1598
        %v1600 = vmul.f32 %v1599, 0.6931472
        %v1601 = vmul.f32 -0.5, %v1497
        %v1602 = vadd.f32 %v1601, 1.0
        %v1603 = vmul.f32 %v1602, %v1497
        %v1604 = vand.u32 2147483647, %v1497
        %vm1605 = vcmp.lt.f32.partialorder %v1604, 0.0004427343
        %v1606 = vsel %vm1605, %v1603, %v1600
        %v1607 = vadd.f32 %v1499, 1.0
        %v1608 = vlog2.pop %v1607
        %v1609 = vmul.f32 %v1608, 0.6931472
        %v1610 = vmul.f32 -0.5, %v1499
        %v1611 = vadd.f32 %v1610, 1.0
        %v1612 = vmul.f32 %v1611, %v1499
        %v1613 = vand.u32 2147483647, %v1499
        %vm1614 = vcmp.lt.f32.partialorder %v1613, 0.0004427343
        %v1615 = vsel %vm1614, %v1612, %v1609
        %v1616 = vadd.f32 %v1501, 1.0
        %v1617 = vlog2.pop %v1616
        %v1618 = vmul.f32 %v1617, 0.6931472
        %v1619 = vmul.f32 -0.5, %v1501
        %v1620 = vadd.f32 %v1619, 1.0
        %v1621 = vmul.f32 %v1620, %v1501
        %v1622 = vand.u32 2147483647, %v1501
        %vm1623 = vcmp.lt.f32.partialorder %v1622, 0.0004427343
        %v1624 = vsel %vm1623, %v1621, %v1618
        %v1625 = vadd.f32 %v1503, 1.0
        %v1626 = vlog2.pop %v1625
        %v1627 = vmul.f32 %v1626, 0.6931472
        %v1628 = vmul.f32 -0.5, %v1503
        %v1629 = vadd.f32 %v1628, 1.0
        %v1630 = vmul.f32 %v1629, %v1503
        %v1631 = vand.u32 2147483647, %v1503
        %vm1632 = vcmp.lt.f32.partialorder %v1631, 0.0004427343
        %v1633 = vsel %vm1632, %v1630, %v1627
        %v1634 = vadd.f32 %v1505, 1.0
        %v1635 = vlog2.pop %v1634
        %v1636 = vmul.f32 %v1635, 0.6931472
        %v1637 = vmul.f32 -0.5, %v1505
        %v1638 = vadd.f32 %v1637, 1.0
        %v1639 = vmul.f32 %v1638, %v1505
        %v1640 = vand.u32 2147483647, %v1505
        %vm1641 = vcmp.lt.f32.partialorder %v1640, 0.0004427343
        %v1642 = vsel %vm1641, %v1639, %v1636
        %v1643 = vadd.f32 %v1507, 1.0
        %v1644 = vlog2.pop %v1643
        %v1645 = vmul.f32 %v1644, 0.6931472
        %v1646 = vmul.f32 -0.5, %v1507
        %v1647 = vadd.f32 %v1646, 1.0
        %v1648 = vmul.f32 %v1647, %v1507
        %v1649 = vand.u32 2147483647, %v1507
        %vm1650 = vcmp.lt.f32.partialorder %v1649, 0.0004427343
        %v1651 = vsel %vm1650, %v1648, %v1645
        %v1652 = vsel %vm1444, %v1382, %v1516
        %v1653 = vsel %vm1445, %v1385, %v1525
        %v1654 = vsel %vm1446, %v1390, %v1534
        %v1655 = vsel %vm1447, %v1393, %v1543
        %v1656 = vsel %vm1448, %v1398, %v1552
        %v1657 = vsel %vm1449, %v1401, %v1561
        %v1658 = vsel %vm1450, %v1406, %v1570
        %v1659 = vsel %vm1451, %v1409, %v1579
        %v1660 = vsel %vm1452, %v1414, %v1588
        %v1661 = vsel %vm1453, %v1417, %v1597
        %v1662 = vsel %vm1454, %v1422, %v1606
        %v1663 = vsel %vm1455, %v1425, %v1615
        %v1664 = vsel %vm1456, %v1430, %v1624
        %v1665 = vsel %vm1457, %v1433, %v1633
        %v1666 = vsel %vm1458, %v1438, %v1642
        %v1667 = vsel %vm1459, %v1441, %v1651
        %v1668 = vpack.c.bf16 %v1653, %v1652
        %v1669 = vpack.c.bf16 %v1655, %v1654
        %v1670 = vpack.c.bf16 %v1657, %v1656
        %v1671 = vpack.c.bf16 %v1659, %v1658
        %v1672 = vpack.c.bf16 %v1661, %v1660
        %v1673 = vpack.c.bf16 %v1663, %v1662
        %v1674 = vpack.c.bf16 %v1665, %v1664
        %v1675 = vpack.c.bf16 %v1667, %v1666
        %v1676 = vld [vmem:[%s3] sm:$0xf]
        %v1677 = vld [vmem:[%s3 + $0x4] sm:$0xf]
        %v1678 = vld [vmem:[%s3 + $0x8] sm:$0xf]
        %v1679 = vld [vmem:[%s3 + $0xc] sm:$0xf]
        %v1680 = vld [vmem:[%s3 + $0x10] sm:$0xf]
        %v1681 = vld [vmem:[%s3 + $0x14] sm:$0xf]
        %v1682 = vld [vmem:[%s3 + $0x18] sm:$0xf]
        %v1683 = vld [vmem:[%s3 + $0x1c] sm:$0xf]
        %v1684 = vld [vmem:[%s4] sm:$0x1]
        %v1686 = vlaneseq
        %v1687 = vshrl.u32 %v1686, 7
        %v1688 = vsub.s32 0, %v1687
        %v1689 = vrot.slane %v1684, %v1688
        %v1699 = vunpack.c.l.b16 %v1676
        %v1700 = vunpack.c.l.b16 %v1677
        %v1701 = vunpack.c.l.b16 %v1678
        %v1702 = vunpack.c.l.b16 %v1679
        %v1703 = vunpack.c.l.b16 %v1680
        %v1704 = vunpack.c.l.b16 %v1681
        %v1705 = vunpack.c.l.b16 %v1682
        %v1706 = vunpack.c.l.b16 %v1683
        %v1707 = vpack.c.b16 %v1700, %v1699
        %v1708 = vpack.c.b16 %v1702, %v1701
        %v1709 = vpack.c.b16 %v1704, %v1703
        %v1710 = vpack.c.b16 %v1706, %v1705
        %vm1715 = vcmask 523264
        %v1717 = vsel %vm1715, %v1668, 0
        %v1720 = vsel %vm1715, %v1669, 0
        %v1723 = vsel %vm1715, %v1670, 0
        %v1726 = vsel %vm1715, %v1671, 0
        %v1729 = vsel %vm1715, %v1672, 0
        %v1732 = vsel %vm1715, %v1673, 0
        %v1735 = vsel %vm1715, %v1674, 0
        %v1738 = vsel %vm1715, %v1675, 0
        %1740 = vmatprep.subr.bf16.mxu0 0
        %1741 = vmatpush1.bf16.msra.mxu0 0
        %1742 = vmatprep.subr.bf16.mxu0 0
        %1743 = vmatpush1.bf16.msra.mxu0 0
        %1744 = vmatprep.subr.bf16.mxu0 0
        %1745 = vmatpush1.bf16.msra.mxu0 0
        %1746 = vmatprep.subr.bf16.mxu0 0
        %1747 = vmatpush1.bf16.msra.mxu0 0
        %1748 = vmatprep.subr.bf16.mxu0 0
        %1749 = vmatpush1.bf16.msra.mxu0 %v1710
        %1750 = vmatprep.subr.bf16.mxu0 0
        %1751 = vmatpush1.bf16.msra.mxu0 %v1709
        %1752 = vmatprep.subr.bf16.mxu0 0
        %1753 = vmatpush1.bf16.msra.mxu0 %v1708
        %1754 = vmatprep.subr.bf16.mxu0 0
        %1755 = vmatpush1.bf16.msra.mxu0 %v1707
        %1756 = vmatprep.subr.bf16.mxu0 0
        %1757 = vmatpush2.bf16.msra.mxu0 0
        %1758 = vmatprep.subr.bf16.mxu0 0
        %1759 = vmatpush2.bf16.msra.mxu0 0
        %1760 = vmatprep.subr.bf16.mxu0 0
        %1761 = vmatpush2.bf16.msra.mxu0 0
        %1762 = vmatprep.subr.bf16.mxu0 0
        %1763 = vmatpush2.bf16.msra.mxu0 0
        %1764 = vmatprep.subr.bf16.mxu0 0
        %1765 = vmatpush2.bf16.msra.mxu0 0
        %1766 = vmatprep.subr.bf16.mxu0 0
        %1767 = vmatpush2.bf16.msra.mxu0 0
        %1768 = vmatprep.subr.bf16.mxu0 0
        %1769 = vmatpush2.bf16.msra.mxu0 0
        %1770 = vmatprep.subr.bf16.mxu0 0
        %1771 = vmatpush2.bf16.msra.mxu0 0
        %1772 = vmatprep.mubr.bf16.mxu0 0
        %1773 = vmatmul.mubr.bf16.gmra.mxu0 %v1717
        %v1774 = vpop.f32.mrf.mxu0
        %v1775 = vadd.f32 %v1689, %v1774
        %v1776 = vpop.f32.mrf.mxu0
        %v1777 = vpop.f32.mrf.mxu0
        %v1778 = vadd.f32 %v1689, %v1777
        %v1779 = vpop.f32.mrf.mxu0
        %1780 = vmatprep.mubr.bf16.mxu0 0
        %1781 = vmatmul.mubr.bf16.gmra.mxu0 %v1720
        %v1782 = vpop.f32.mrf.mxu0
        %v1783 = vadd.f32 %v1689, %v1782
        %v1784 = vpop.f32.mrf.mxu0
        %v1785 = vpop.f32.mrf.mxu0
        %v1786 = vadd.f32 %v1689, %v1785
        %v1787 = vpop.f32.mrf.mxu0
        %1788 = vmatprep.mubr.bf16.mxu0 0
        %1789 = vmatmul.mubr.bf16.gmra.mxu0 %v1723
        %v1790 = vpop.f32.mrf.mxu0
        %v1791 = vadd.f32 %v1689, %v1790
        %v1792 = vpop.f32.mrf.mxu0
        %v1793 = vpop.f32.mrf.mxu0
        %v1794 = vadd.f32 %v1689, %v1793
        %v1795 = vpop.f32.mrf.mxu0
        %1796 = vmatprep.mubr.bf16.mxu0 0
        %1797 = vmatmul.mubr.bf16.gmra.mxu0 %v1726
        %v1798 = vpop.f32.mrf.mxu0
        %v1799 = vadd.f32 %v1689, %v1798
        %v1800 = vpop.f32.mrf.mxu0
        %v1801 = vpop.f32.mrf.mxu0
        %v1802 = vadd.f32 %v1689, %v1801
        %v1803 = vpop.f32.mrf.mxu0
        %1804 = vmatprep.mubr.bf16.mxu0 0
        %1805 = vmatmul.mubr.bf16.gmra.mxu0 %v1729
        %v1806 = vpop.f32.mrf.mxu0
        %v1807 = vadd.f32 %v1689, %v1806
        %v1808 = vpop.f32.mrf.mxu0
        %v1809 = vpop.f32.mrf.mxu0
        %v1810 = vadd.f32 %v1689, %v1809
        %v1811 = vpop.f32.mrf.mxu0
        %1812 = vmatprep.mubr.bf16.mxu0 0
        %1813 = vmatmul.mubr.bf16.gmra.mxu0 %v1732
        %v1814 = vpop.f32.mrf.mxu0
        %v1815 = vadd.f32 %v1689, %v1814
        %v1816 = vpop.f32.mrf.mxu0
        %v1817 = vpop.f32.mrf.mxu0
        %v1818 = vadd.f32 %v1689, %v1817
        %v1819 = vpop.f32.mrf.mxu0
        %1820 = vmatprep.mubr.bf16.mxu0 0
        %1821 = vmatmul.mubr.bf16.gmra.mxu0 %v1735
        %v1822 = vpop.f32.mrf.mxu0
        %v1823 = vadd.f32 %v1689, %v1822
        %v1824 = vpop.f32.mrf.mxu0
        %v1825 = vpop.f32.mrf.mxu0
        %v1826 = vadd.f32 %v1689, %v1825
        %v1827 = vpop.f32.mrf.mxu0
        %1828 = vmatprep.mubr.bf16.mxu0 0
        %1829 = vmatmul.mubr.bf16.gmra.mxu0 %v1738
        %v1830 = vpop.f32.mrf.mxu0
        %v1831 = vadd.f32 %v1689, %v1830
        %v1832 = vpop.f32.mrf.mxu0
        %v1833 = vpop.f32.mrf.mxu0
        %v1834 = vadd.f32 %v1689, %v1833
        %v1835 = vpop.f32.mrf.mxu0
        %1836 = vdwg.mxu0
        %v1837 = vlaneseq
        %v1838 = vand.u32 %v1837, 127
        %vm1839 = vcmp.gt.f32.partialorder %v1775, 20.0
        %vm1840 = vcmp.gt.f32.partialorder %v1778, 20.0
        %vm1841 = vcmp.gt.f32.partialorder %v1783, 20.0
        %vm1842 = vcmp.gt.f32.partialorder %v1786, 20.0
        %vm1843 = vcmp.gt.f32.partialorder %v1791, 20.0
        %vm1844 = vcmp.gt.f32.partialorder %v1794, 20.0
        %vm1845 = vcmp.gt.f32.partialorder %v1799, 20.0
        %vm1846 = vcmp.gt.f32.partialorder %v1802, 20.0
        %vm1847 = vcmp.gt.f32.partialorder %v1807, 20.0
        %vm1848 = vcmp.gt.f32.partialorder %v1810, 20.0
        %vm1849 = vcmp.gt.f32.partialorder %v1815, 20.0
        %vm1850 = vcmp.gt.f32.partialorder %v1818, 20.0
        %vm1851 = vcmp.gt.f32.partialorder %v1823, 20.0
        %vm1852 = vcmp.gt.f32.partialorder %v1826, 20.0
        %vm1853 = vcmp.gt.f32.partialorder %v1831, 20.0
        %vm1854 = vcmp.gt.f32.partialorder %v1834, 20.0
        %v1855 = vmin.f32 %v1775, 20.0
        %v1856 = vmin.f32 %v1778, 20.0
        %v1857 = vmin.f32 %v1783, 20.0
        %v1858 = vmin.f32 %v1786, 20.0
        %v1859 = vmin.f32 %v1791, 20.0
        %v1860 = vmin.f32 %v1794, 20.0
        %v1861 = vmin.f32 %v1799, 20.0
        %v1862 = vmin.f32 %v1802, 20.0
        %v1863 = vmin.f32 %v1807, 20.0
        %v1864 = vmin.f32 %v1810, 20.0
        %v1865 = vmin.f32 %v1815, 20.0
        %v1866 = vmin.f32 %v1818, 20.0
        %v1867 = vmin.f32 %v1823, 20.0
        %v1868 = vmin.f32 %v1826, 20.0
        %v1869 = vmin.f32 %v1831, 20.0
        %v1870 = vmin.f32 %v1834, 20.0
        %v1871 = vmul.f32 %v1855, 1.442695
        %v1872 = vpow.pop %v1871
        %v1873 = vmul.f32 %v1856, 1.442695
        %v1874 = vpow.pop %v1873
        %v1875 = vmul.f32 %v1857, 1.442695
        %v1876 = vpow.pop %v1875
        %v1877 = vmul.f32 %v1858, 1.442695
        %v1878 = vpow.pop %v1877
        %v1879 = vmul.f32 %v1859, 1.442695
        %v1880 = vpow.pop %v1879
        %v1881 = vmul.f32 %v1860, 1.442695
        %v1882 = vpow.pop %v1881
        %v1883 = vmul.f32 %v1861, 1.442695
        %v1884 = vpow.pop %v1883
        %v1885 = vmul.f32 %v1862, 1.442695
        %v1886 = vpow.pop %v1885
        %v1887 = vmul.f32 %v1863, 1.442695
        %v1888 = vpow.pop %v1887
        %v1889 = vmul.f32 %v1864, 1.442695
        %v1890 = vpow.pop %v1889
        %v1891 = vmul.f32 %v1865, 1.442695
        %v1892 = vpow.pop %v1891
        %v1893 = vmul.f32 %v1866, 1.442695
        %v1894 = vpow.pop %v1893
        %v1895 = vmul.f32 %v1867, 1.442695
        %v1896 = vpow.pop %v1895
        %v1897 = vmul.f32 %v1868, 1.442695
        %v1898 = vpow.pop %v1897
        %v1899 = vmul.f32 %v1869, 1.442695
        %v1900 = vpow.pop %v1899
        %v1901 = vmul.f32 %v1870, 1.442695
        %v1902 = vpow.pop %v1901
        %v1903 = vadd.f32 %v1872, 1.0
        %v1904 = vlog2.pop %v1903
        %v1905 = vmul.f32 %v1904, 0.6931472
        %v1906 = vmul.f32 -0.5, %v1872
        %v1907 = vadd.f32 %v1906, 1.0
        %v1908 = vmul.f32 %v1907, %v1872
        %v1909 = vand.u32 2147483647, %v1872
        %vm1910 = vcmp.lt.f32.partialorder %v1909, 0.0004427343
        %v1911 = vsel %vm1910, %v1908, %v1905
        %v1912 = vadd.f32 %v1874, 1.0
        %v1913 = vlog2.pop %v1912
        %v1914 = vmul.f32 %v1913, 0.6931472
        %v1915 = vmul.f32 -0.5, %v1874
        %v1916 = vadd.f32 %v1915, 1.0
        %v1917 = vmul.f32 %v1916, %v1874
        %v1918 = vand.u32 2147483647, %v1874
        %vm1919 = vcmp.lt.f32.partialorder %v1918, 0.0004427343
        %v1920 = vsel %vm1919, %v1917, %v1914
        %v1921 = vadd.f32 %v1876, 1.0
        %v1922 = vlog2.pop %v1921
        %v1923 = vmul.f32 %v1922, 0.6931472
        %v1924 = vmul.f32 -0.5, %v1876
        %v1925 = vadd.f32 %v1924, 1.0
        %v1926 = vmul.f32 %v1925, %v1876
        %v1927 = vand.u32 2147483647, %v1876
        %vm1928 = vcmp.lt.f32.partialorder %v1927, 0.0004427343
        %v1929 = vsel %vm1928, %v1926, %v1923
        %v1930 = vadd.f32 %v1878, 1.0
        %v1931 = vlog2.pop %v1930
        %v1932 = vmul.f32 %v1931, 0.6931472
        %v1933 = vmul.f32 -0.5, %v1878
        %v1934 = vadd.f32 %v1933, 1.0
        %v1935 = vmul.f32 %v1934, %v1878
        %v1936 = vand.u32 2147483647, %v1878
        %vm1937 = vcmp.lt.f32.partialorder %v1936, 0.0004427343
        %v1938 = vsel %vm1937, %v1935, %v1932
        %v1939 = vadd.f32 %v1880, 1.0
        %v1940 = vlog2.pop %v1939
        %v1941 = vmul.f32 %v1940, 0.6931472
        %v1942 = vmul.f32 -0.5, %v1880
        %v1943 = vadd.f32 %v1942, 1.0
        %v1944 = vmul.f32 %v1943, %v1880
        %v1945 = vand.u32 2147483647, %v1880
        %vm1946 = vcmp.lt.f32.partialorder %v1945, 0.0004427343
        %v1947 = vsel %vm1946, %v1944, %v1941
        %v1948 = vadd.f32 %v1882, 1.0
        %v1949 = vlog2.pop %v1948
        %v1950 = vmul.f32 %v1949, 0.6931472
        %v1951 = vmul.f32 -0.5, %v1882
        %v1952 = vadd.f32 %v1951, 1.0
        %v1953 = vmul.f32 %v1952, %v1882
        %v1954 = vand.u32 2147483647, %v1882
        %vm1955 = vcmp.lt.f32.partialorder %v1954, 0.0004427343
        %v1956 = vsel %vm1955, %v1953, %v1950
        %v1957 = vadd.f32 %v1884, 1.0
        %v1958 = vlog2.pop %v1957
        %v1959 = vmul.f32 %v1958, 0.6931472
        %v1960 = vmul.f32 -0.5, %v1884
        %v1961 = vadd.f32 %v1960, 1.0
        %v1962 = vmul.f32 %v1961, %v1884
        %v1963 = vand.u32 2147483647, %v1884
        %vm1964 = vcmp.lt.f32.partialorder %v1963, 0.0004427343
        %v1965 = vsel %vm1964, %v1962, %v1959
        %v1966 = vadd.f32 %v1886, 1.0
        %v1967 = vlog2.pop %v1966
        %v1968 = vmul.f32 %v1967, 0.6931472
        %v1969 = vmul.f32 -0.5, %v1886
        %v1970 = vadd.f32 %v1969, 1.0
        %v1971 = vmul.f32 %v1970, %v1886
        %v1972 = vand.u32 2147483647, %v1886
        %vm1973 = vcmp.lt.f32.partialorder %v1972, 0.0004427343
        %v1974 = vsel %vm1973, %v1971, %v1968
        %v1975 = vadd.f32 %v1888, 1.0
        %v1976 = vlog2.pop %v1975
        %v1977 = vmul.f32 %v1976, 0.6931472
        %v1978 = vmul.f32 -0.5, %v1888
        %v1979 = vadd.f32 %v1978, 1.0
        %v1980 = vmul.f32 %v1979, %v1888
        %v1981 = vand.u32 2147483647, %v1888
        %vm1982 = vcmp.lt.f32.partialorder %v1981, 0.0004427343
        %v1983 = vsel %vm1982, %v1980, %v1977
        %v1984 = vadd.f32 %v1890, 1.0
        %v1985 = vlog2.pop %v1984
        %v1986 = vmul.f32 %v1985, 0.6931472
        %v1987 = vmul.f32 -0.5, %v1890
        %v1988 = vadd.f32 %v1987, 1.0
        %v1989 = vmul.f32 %v1988, %v1890
        %v1990 = vand.u32 2147483647, %v1890
        %vm1991 = vcmp.lt.f32.partialorder %v1990, 0.0004427343
        %v1992 = vsel %vm1991, %v1989, %v1986
        %v1993 = vadd.f32 %v1892, 1.0
        %v1994 = vlog2.pop %v1993
        %v1995 = vmul.f32 %v1994, 0.6931472
        %v1996 = vmul.f32 -0.5, %v1892
        %v1997 = vadd.f32 %v1996, 1.0
        %v1998 = vmul.f32 %v1997, %v1892
        %v1999 = vand.u32 2147483647, %v1892
        %vm2000 = vcmp.lt.f32.partialorder %v1999, 0.0004427343
        %v2001 = vsel %vm2000, %v1998, %v1995
        %v2002 = vadd.f32 %v1894, 1.0
        %v2003 = vlog2.pop %v2002
        %v2004 = vmul.f32 %v2003, 0.6931472
        %v2005 = vmul.f32 -0.5, %v1894
        %v2006 = vadd.f32 %v2005, 1.0
        %v2007 = vmul.f32 %v2006, %v1894
        %v2008 = vand.u32 2147483647, %v1894
        %vm2009 = vcmp.lt.f32.partialorder %v2008, 0.0004427343
        %v2010 = vsel %vm2009, %v2007, %v2004
        %v2011 = vadd.f32 %v1896, 1.0
        %v2012 = vlog2.pop %v2011
        %v2013 = vmul.f32 %v2012, 0.6931472
        %v2014 = vmul.f32 -0.5, %v1896
        %v2015 = vadd.f32 %v2014, 1.0
        %v2016 = vmul.f32 %v2015, %v1896
        %v2017 = vand.u32 2147483647, %v1896
        %vm2018 = vcmp.lt.f32.partialorder %v2017, 0.0004427343
        %v2019 = vsel %vm2018, %v2016, %v2013
        %v2020 = vadd.f32 %v1898, 1.0
        %v2021 = vlog2.pop %v2020
        %v2022 = vmul.f32 %v2021, 0.6931472
        %v2023 = vmul.f32 -0.5, %v1898
        %v2024 = vadd.f32 %v2023, 1.0
        %v2025 = vmul.f32 %v2024, %v1898
        %v2026 = vand.u32 2147483647, %v1898
        %vm2027 = vcmp.lt.f32.partialorder %v2026, 0.0004427343
        %v2028 = vsel %vm2027, %v2025, %v2022
        %v2029 = vadd.f32 %v1900, 1.0
        %v2030 = vlog2.pop %v2029
        %v2031 = vmul.f32 %v2030, 0.6931472
        %v2032 = vmul.f32 -0.5, %v1900
        %v2033 = vadd.f32 %v2032, 1.0
        %v2034 = vmul.f32 %v2033, %v1900
        %v2035 = vand.u32 2147483647, %v1900
        %vm2036 = vcmp.lt.f32.partialorder %v2035, 0.0004427343
        %v2037 = vsel %vm2036, %v2034, %v2031
        %v2038 = vadd.f32 %v1902, 1.0
        %v2039 = vlog2.pop %v2038
        %v2040 = vmul.f32 %v2039, 0.6931472
        %v2041 = vmul.f32 -0.5, %v1902
        %v2042 = vadd.f32 %v2041, 1.0
        %v2043 = vmul.f32 %v2042, %v1902
        %v2044 = vand.u32 2147483647, %v1902
        %vm2045 = vcmp.lt.f32.partialorder %v2044, 0.0004427343
        %v2046 = vsel %vm2045, %v2043, %v2040
        %v2047 = vsel %vm1839, %v1775, %v1911
        %v2048 = vsel %vm1840, %v1778, %v1920
        %v2049 = vsel %vm1841, %v1783, %v1929
        %v2050 = vsel %vm1842, %v1786, %v1938
        %v2051 = vsel %vm1843, %v1791, %v1947
        %v2052 = vsel %vm1844, %v1794, %v1956
        %v2053 = vsel %vm1845, %v1799, %v1965
        %v2054 = vsel %vm1846, %v1802, %v1974
        %v2055 = vsel %vm1847, %v1807, %v1983
        %v2056 = vsel %vm1848, %v1810, %v1992
        %v2057 = vsel %vm1849, %v1815, %v2001
        %v2058 = vsel %vm1850, %v1818, %v2010
        %v2059 = vsel %vm1851, %v1823, %v2019
        %v2060 = vsel %vm1852, %v1826, %v2028
        %v2061 = vsel %vm1853, %v1831, %v2037
        %v2062 = vsel %vm1854, %v1834, %v2046
        %vm2063 = vcmp.lt.s32.totalorder %v1838, 16
        %v2064 = vsel %vm2063, %v1775, %v2047
        %v2065 = vsel %vm2063, %v1778, %v2048
        %v2066 = vsel %vm2063, %v1783, %v2049
        %v2067 = vsel %vm2063, %v1786, %v2050
        %v2068 = vsel %vm2063, %v1791, %v2051
        %v2069 = vsel %vm2063, %v1794, %v2052
        %v2070 = vsel %vm2063, %v1799, %v2053
        %v2071 = vsel %vm2063, %v1802, %v2054
        %v2072 = vsel %vm2063, %v1807, %v2055
        %v2073 = vsel %vm2063, %v1810, %v2056
        %v2074 = vsel %vm2063, %v1815, %v2057
        %v2075 = vsel %vm2063, %v1818, %v2058
        %v2076 = vsel %vm2063, %v1823, %v2059
        %v2077 = vsel %vm2063, %v1826, %v2060
        %v2078 = vsel %vm2063, %v1831, %v2061
        %v2079 = vsel %vm2063, %v1834, %v2062
        %vm2080 = vcmask 261120
        %2081 = vst.msk [vmem:[%s246] sm:$0xff] %vm2080, %v2064
        %2082 = vst.msk [vmem:[%s246 + $0x8] sm:$0xff] %vm2080, %v2065
        %2083 = vst.msk [vmem:[%s246 + $0x10] sm:$0xff] %vm2080, %v2066
        %2084 = vst.msk [vmem:[%s246 + $0x18] sm:$0xff] %vm2080, %v2067
        %2085 = vst.msk [vmem:[%s246 + $0x20] sm:$0xff] %vm2080, %v2068
        %2086 = vst.msk [vmem:[%s246 + $0x28] sm:$0xff] %vm2080, %v2069
        %2087 = vst.msk [vmem:[%s246 + $0x30] sm:$0xff] %vm2080, %v2070
        %2088 = vst.msk [vmem:[%s246 + $0x38] sm:$0xff] %vm2080, %v2071
        %2089 = vst.msk [vmem:[%s246 + $0x40] sm:$0xff] %vm2080, %v2072
        %2090 = vst.msk [vmem:[%s246 + $0x48] sm:$0xff] %vm2080, %v2073
        %2091 = vst.msk [vmem:[%s246 + $0x50] sm:$0xff] %vm2080, %v2074
        %2092 = vst.msk [vmem:[%s246 + $0x58] sm:$0xff] %vm2080, %v2075
        %2093 = vst.msk [vmem:[%s246 + $0x60] sm:$0xff] %vm2080, %v2076
        %2094 = vst.msk [vmem:[%s246 + $0x68] sm:$0xff] %vm2080, %v2077
        %2095 = vst.msk [vmem:[%s246 + $0x70] sm:$0xff] %vm2080, %v2078
        %2096 = vst.msk [vmem:[%s246 + $0x78] sm:$0xff] %vm2080, %v2079
        %s2097 = smul.u32 16, %s19
        %p2098 = scmp.lt.s32.totalorder %s2097, 31
        %s2099 = scalar_select %p2098, %s2097, 31
        %s2100 = smul.addr %s2099, 8
        %s2101 = scalar_lea.vmem %s5, %s2100
        // Predicated region
        $region45: #{tpu_custom_call.1} parent=39 // pred_check
          %p2102 = pneg %p147
        $region46: #{tpu_custom_call.1} parent=39 // pred_check_branch
          %2104 = sbr.rel (%p2102) target = $region48
        $region47: #{tpu_custom_call.1} parent=39 // pred_region
          %s2105 = smul.u32 16, %s19
        $region48: #{tpu_custom_call.1} parent=39 // pred_fallthru
          _
      $region40: #{tpu_custom_call.1} parent=5 // pred_fallthru
        _
      %p2106 = scmp.le.s32.totalorder 2, %s14
      // Predicated region
      $region49: #{tpu_custom_call.1} parent=5 // pred_check
        %p2107 = pneg %p2106
      $region50: #{tpu_custom_call.1} parent=5 // pred_check_branch
        %2109 = sbr.rel (%p2107) target = $region52
      $region51: #{tpu_custom_call.1} parent=5 // pred_region
        %s2110 = ssub.s32 %s14, 2
        // Predicated region
        $region53: #{tpu_custom_call.1} parent=51 // pred_check
          %p2111 = pneg %p153
        $region54: #{tpu_custom_call.1} parent=51 // pred_check_branch
          %2113 = sbr.rel (%p2111) target = $region56
        $region55: #{tpu_custom_call.1} parent=51 // pred_region
          %s2114 = smul.u32 16, %s20
          %p2115 = scmp.lt.s32.totalorder %s2114, 31
          %s2116 = scalar_select %p2115, %s2114, 31
          %s2117 = smul.addr %s2116, 8
          %s2118 = scalar_lea.vmem %s5, %s2117
        $region56: #{tpu_custom_call.1} parent=51 // pred_fallthru
          _
      $region52: #{tpu_custom_call.1} parent=5 // pred_fallthru
        _
    $region6: #{tpu_custom_call.1} parent=1 // loop_footer
      %s18 = sadd.s32 1, %s14
    $region7: #{tpu_custom_call.1} parent=1 // loop_footer_branch
      %13 = sbr.rel target = $region3
    $region8: #{tpu_custom_call.1} parent=1 // loop_exit
      _
    %2119 = vsyncpa [#allocation3], 1
    %s2120 = scalar_lea.sflag [#allocation3], 1
    %2121 = vsyncpa %s2120, 1

</llo_original>
